<compile_context>
chip_gen: v7x
topology: tpu7x:2x2x1
jax: 0.10.0
libtpu: 0.0.40
codegen_flags: <defaults>
</compile_context>

<pallas_src>
import functools

import jax
import jax.numpy as jnp
import numpy as np
from jax import lax
from jax.experimental import pallas as pl
from jax.experimental.pallas import tpu as pltpu


# -----------------------------------------------------------------------------
# Parameter construction (mirrors SobelConv2d.__init__ exactly, bugs included)
# -----------------------------------------------------------------------------
def make_sobel_weight(out_channels, in_channels, kernel_size, groups=1):
    """Returns OIHW float32 weight identical to the PyTorch init loops."""
    cin_g = in_channels // groups
    w = np.zeros((out_channels, cin_g, kernel_size, kernel_size), dtype=np.float32)
    kernel_mid = kernel_size // 2
    for i in range(out_channels):
        if i % 4 == 0:
            w[i, :, 0, :] = -1
            w[i, :, 0, kernel_mid] = -2
            w[i, :, -1, :] = 1
            w[i, :, -1, kernel_mid] = 2
        elif i % 4 == 1:
            w[i, :, :, 0] = -1
            w[i, :, kernel_mid, 0] = -2
            w[i, :, :, -1] = 1
            w[i, :, kernel_mid, 0] = 2  # replicates the original overwrite "bug"
        elif i % 4 == 2:
            w[i, :, 0, 0] = -2
            for j in range(0, kernel_mid + 1):
                w[i, :, kernel_mid - j, j] = -1
                w[i, :, kernel_size - 1 - j, kernel_mid + j] = 1
            w[i, :, -1, -1] = 2
        else:
            w[i, :, -1, 0] = -2
            for j in range(0, kernel_mid + 1):
                w[i, :, kernel_mid + j, j] = -1
                w[i, :, j, kernel_mid + j] = 1
            w[i, :, 0, -1] = 2
    return jnp.asarray(w)


# -----------------------------------------------------------------------------
# Pallas kernel: per-image tap-accumulated conv on a flat, lane-dense layout.
# One grid step == `b_blk` batch elements (grid=(N//b_blk,), "parallel").
# -----------------------------------------------------------------------------
def _sobel_conv_kernel(x_ref, w_ref, b_ref, o_ref, *,
                       cin, cout, h, w, kh, kw, stride, padding,
                       h_out, w_out, b_blk):
    # x_ref: (b_blk, cin, h*w)        unpadded input, flat spatial (lane-dense DMA)
    # w_ref: (kh*kw, cout, cin)       per-tap weight matrices (already * sobel_factor)
    # b_ref: (cout, 1)                bias
    # o_ref: (b_blk, cout, h_out*w_out)   flat spatial output (lane-dense store)
    f32 = jnp.float32
    pad = padding
    wp = w + 2 * pad                        # padded width
    r_rows = (h_out - 1) * stride + 1       # rows of the flat accumulator
    l_acc = r_rows * wp                     # accumulator flat length
    hw = h_out * w_out

    # Loop-invariants hoisted out of the per-image loop (JAX does not CSE
    # broadcast_in_dim, so materialize these once).
    bias_b = jnp.broadcast_to(b_ref[...].astype(f32), (cout, hw))
    if pad > 0:
        zcol = jnp.zeros((cin, h, pad), f32)
        ztop = jnp.zeros((cin, pad, wp), f32)
    # bottom padding plus one spare zero row so the per-tap flat slices
    # (length l_acc starting at offset i*wp+j) never run past the buffer.
    zbot = jnp.zeros((cin, pad + 1, wp), f32)

    def per_image(b, carry):
        # --- build the zero-padded image as a flat (lane-dense) value -------
        # (padding folded into the kernel: no wrapper-side jnp.pad round trip)
        x2d = x_ref[b].astype(f32).reshape(cin, h, w)
        if pad > 0:
            x2d = jnp.concatenate([zcol, x2d, zcol], axis=2)      # (cin, h, wp)
            xp = jnp.concatenate([ztop, x2d, zbot], axis=1)
        else:
            xp = jnp.concatenate([x2d, zbot], axis=1)
        rows_total = xp.shape[1]
        xflat = xp.reshape(cin, rows_total * wp)

        # --- tap-accumulated conv: kh*kw small MXU dots, f32 accumulator ----
        # Each tap (i, j) is just a static flat-offset slice of xflat; no
        # per-tap (H,W)->HW relayouts and no (K, HW) im2col materialization.
        acc = jnp.zeros((cout, l_acc), f32)
        for i in range(kh):
            for j in range(kw):
                d = i * wp + j
                patch = lax.slice(xflat, (0, d), (cin, d + l_acc))
                acc = acc + jnp.dot(w_ref[i * kw + j], patch,
                                    preferred_element_type=f32)

        # --- extract valid window, add bias, single lane-dense store --------
        acc3 = acc.reshape(cout, r_rows, wp)
        out = lax.slice(acc3, (0, 0, 0),
                        (cout, r_rows, (w_out - 1) * stride + 1),
                        (1, stride, stride))                      # (cout, h_out, w_out)
        o_ref[b] = (out.reshape(cout, hw) + bias_b).astype(o_ref.dtype)
        return carry

    lax.fori_loop(0, b_blk, per_image, 0, unroll=(b_blk <= 4))


def sobel_conv2d(x_nchw, sobel_weight_oihw, sobel_factor, bias,
                 stride=1, padding=0, dilation=1, groups=1, batch_block=None):
    """Forward pass of SobelConv2d.  x_nchw: (N, Cin, H, W) float32 -> NCHW out."""
    n, cin, h, w = x_nchw.shape
    cout, cin_g, kh, kw = sobel_weight_oihw.shape
    assert groups == 1 and cin_g == cin, "groups != 1 not supported"  # TODO(synk): groups > 1
    assert dilation == 1, "dilation != 1 not supported"               # TODO(synk): dilation > 1

    hp, wp = h + 2 * padding, w + 2 * padding
    h_out = (hp - kh) // stride + 1
    w_out = (wp - kw) // stride + 1
    hw = h_out * w_out

    # weight = sobel_weight * sobel_factor  (factor is (Cout,1,1,1)), repacked
    # as per-tap (Cout, Cin) matrices indexed by t = i*kw + j.
    scaled = (sobel_weight_oihw * sobel_factor).astype(jnp.float32)
    w_taps = jnp.transpose(scaled, (2, 3, 0, 1)).reshape(kh * kw, cout, cin)

    bias_arr = (jnp.zeros((cout, 1), jnp.float32) if bias is None
                else bias.reshape(cout, 1).astype(jnp.float32))

    # Flat spatial layout (free trailing-dim reshape): lane-dense DMA rows.
    x_flat = x_nchw.reshape(n, cin, h * w)

    # Pick batch_block: amortize the ~0.35us per-grid-step overhead, but keep
    # the "parallel" grid axis length >= 2 so both v7x TensorCores get work.
    if batch_block is None:
        batch_block = 1
        if n >= 2:
            per_image_bytes = 4 * (cin * h * w + cout * hw)
            budget = 8 << 20      # ~8 MiB of HBM traffic per grid step
            for bb in range(n // 2, 0, -1):
                if n % bb == 0 and bb * per_image_bytes <= budget:
                    batch_block = bb
                    break
    assert n % batch_block == 0, "batch_block must divide batch"

    kernel = functools.partial(
        _sobel_conv_kernel, cin=cin, cout=cout, h=h, w=w, kh=kh, kw=kw,
        stride=stride, padding=padding, h_out=h_out, w_out=w_out,
        b_blk=batch_block)

    r_rows = (h_out - 1) * stride + 1
    flops = 2 * n * kh * kw * cout * cin * r_rows * wp
    bytes_accessed = 4 * (x_flat.size + w_taps.size + bias_arr.size + n * cout * hw)

    # Rough per-step VMEM footprint (double-buffered I/O tiles + in-kernel
    # temporaries), clamped to a safe range.
    io_bytes = 4 * batch_block * (cin * h * w + cout * hw)
    tmp_bytes = 4 * 4 * (cin * (hp + 1) * wp + cout * r_rows * wp)
    vmem_limit = int(min(96 << 20, max(32 << 20, 2 * io_bytes + tmp_bytes)))

    out_flat = pl.pallas_call(
        kernel,
        out_shape=jax.ShapeDtypeStruct((n, cout, hw), x_nchw.dtype),
        grid_spec=pltpu.PrefetchScalarGridSpec(
            num_scalar_prefetch=0,
            grid=(n // batch_block,),
            in_specs=[
                pl.BlockSpec((batch_block, cin, h * w), lambda b: (b, 0, 0)),
                pl.BlockSpec((kh * kw, cout, cin), lambda b: (0, 0, 0)),
                pl.BlockSpec((cout, 1), lambda b: (0, 0)),
            ],
            out_specs=pl.BlockSpec((batch_block, cout, hw), lambda b: (b, 0, 0)),
        ),
        compiler_params=pltpu.CompilerParams(
            dimension_semantics=("parallel",),
            vmem_limit_bytes=vmem_limit,
        ),
        cost_estimate=pl.CostEstimate(
            flops=flops, transcendentals=0, bytes_accessed=bytes_accessed),
    )(x_flat, w_taps, bias_arr)

    # (N, Cout, Hout*Wout) -> (N, Cout, Hout, Wout): trailing-dim reshape, free.
    return out_flat.reshape(n, cout, h_out, w_out)


# -----------------------------------------------------------------------------
# Demo / self-check
# -----------------------------------------------------------------------------
if __name__ == "__main__":
    N, CIN, H, W = 2, 4, 16, 16
    COUT, KSIZE = 8, 3
    STRIDE, PADDING = 1, 1

    key = jax.random.PRNGKey(0)
    kx, kf, kb = jax.random.split(key, 3)

    x = jax.random.normal(kx, (N, CIN, H, W), dtype=jnp.float32)

    sobel_weight = make_sobel_weight(COUT, CIN, KSIZE)              # OIHW, fixed
    # module __init__ uses ones / zeros; use deterministic non-trivial values
    # so the scale / bias paths are exercised.
    sobel_factor = jax.random.normal(kf, (COUT, 1, 1, 1), dtype=jnp.float32)
    bias = jax.random.normal(kb, (COUT,), dtype=jnp.float32)

    out = sobel_conv2d(x, sobel_weight, sobel_factor, bias,
                       stride=STRIDE, padding=PADDING)
    out = jax.block_until_ready(out)

    # Reference with XLA's conv (same semantics as F.conv2d, NCHW / OIHW).
    ref = jax.lax.conv_general_dilated(
        x, sobel_weight * sobel_factor,
        window_strides=(STRIDE, STRIDE),
        padding=((PADDING, PADDING), (PADDING, PADDING)),
        dimension_numbers=("NCHW", "OIHW", "NCHW"),
    ) + bias.reshape(1, COUT, 1, 1)

    np.testing.assert_allclose(np.asarray(out), np.asarray(ref),
                               rtol=1e-4, atol=1e-4)
    print("KERNEL_OK")
</pallas_src>

<mosaic_0001>
module attributes {stable_mosaic.version = 11 : i64} {
  func.func @_sobel_conv_kernel(%arg0: i32, %arg1: memref<1x4x256xf32, #tpu.memory_space<vmem>>, %arg2: memref<9x8x4xf32, #tpu.memory_space<vmem>>, %arg3: memref<8x1xf32, #tpu.memory_space<vmem>>, %arg4: memref<1x8x256xf32, #tpu.memory_space<vmem>>) attributes {dimension_semantics = [#tpu.dimension_semantics<parallel>], iteration_bounds = array<i64: 2>, scalar_prefetch = 0 : i64, scratch_operands = 0 : i64, tpu.core_type = #tpu.core_type<tc>, window_params = [{transform_indices = @transform_0, window_bounds = array<i64: 1, 4, 256>}, {pipeline_mode = #tpu.pipeline_mode<synchronous>, transform_indices = @transform_1, window_bounds = array<i64: 9, 8, 4>}, {pipeline_mode = #tpu.pipeline_mode<synchronous>, transform_indices = @transform_2, window_bounds = array<i64: 8, 1>}, {transform_indices = @transform_3, window_bounds = array<i64: 1, 8, 256>}]} {
    %c0 = arith.constant 0 : index
    %c0_0 = arith.constant 0 : index
    %0 = vector.load %arg3[%c0, %c0_0] : memref<8x1xf32, #tpu.memory_space<vmem>>, vector<8x1xf32>
    %1 = vector.shape_cast %0 : vector<8x1xf32> to vector<8x1xf32>
    %2 = vector.broadcast %1 : vector<8x1xf32> to vector<8x256xf32>
    %cst = arith.constant 0.000000e+00 : f32
    %3 = vector.broadcast %cst : f32 to vector<4x16x1xf32>
    %cst_1 = arith.constant 0.000000e+00 : f32
    %4 = vector.broadcast %cst_1 : f32 to vector<4x1x18xf32>
    %cst_2 = arith.constant 0.000000e+00 : f32
    %5 = vector.broadcast %cst_2 : f32 to vector<4x2x18xf32>
    %c0_i32 = arith.constant 0 : i32
    %6 = arith.index_cast %c0_i32 : i32 to index
    %c0_3 = arith.constant 0 : index
    %c0_4 = arith.constant 0 : index
    %7 = vector.load %arg1[%6, %c0_3, %c0_4] : memref<1x4x256xf32, #tpu.memory_space<vmem>>, vector<1x4x256xf32>
    %8 = vector.shape_cast %7 : vector<1x4x256xf32> to vector<4x256xf32>
    %9 = vector.shape_cast %8 : vector<4x256xf32> to vector<4x16x16xf32>
    %10 = tpu.concatenate %3, %9, %3 in 2 : vector<4x16x1xf32>, vector<4x16x16xf32>, vector<4x16x1xf32> -> vector<4x16x18xf32>
    %11 = tpu.concatenate %4, %10, %5 in 1 : vector<4x1x18xf32>, vector<4x16x18xf32>, vector<4x2x18xf32> -> vector<4x19x18xf32>
    %12 = vector.shape_cast %11 : vector<4x19x18xf32> to vector<4x342xf32>
    %cst_5 = arith.constant 0.000000e+00 : f32
    %13 = vector.broadcast %cst_5 : f32 to vector<8x288xf32>
    %14 = vector.extract_strided_slice %12 {offsets = [0, 0], sizes = [4, 288], strides = [1, 1]} : vector<4x342xf32> to vector<4x288xf32>
    %c0_6 = arith.constant 0 : index
    %c0_7 = arith.constant 0 : index
    %c0_8 = arith.constant 0 : index
    %15 = vector.load %arg2[%c0_6, %c0_7, %c0_8] : memref<9x8x4xf32, #tpu.memory_space<vmem>>, vector<1x8x4xf32>
    %16 = vector.shape_cast %15 : vector<1x8x4xf32> to vector<8x4xf32>
    %cst_9 = arith.constant dense<0.000000e+00> : vector<8x288xf32>
    %17 = tpu.matmul %16, %14, %cst_9 {dimension_numbers = #tpu.dot_dimension_numbers<[1], [0], [0], [1], [0, 0, 1, 1], [], []>} : vector<8x4xf32>, vector<4x288xf32>, vector<8x288xf32> -> vector<8x288xf32>
    %18 = arith.addf %13, %17 : vector<8x288xf32>
    %19 = vector.extract_strided_slice %12 {offsets = [0, 1], sizes = [4, 288], strides = [1, 1]} : vector<4x342xf32> to vector<4x288xf32>
    %c1 = arith.constant 1 : index
    %c0_10 = arith.constant 0 : index
    %c0_11 = arith.constant 0 : index
    %20 = vector.load %arg2[%c1, %c0_10, %c0_11] : memref<9x8x4xf32, #tpu.memory_space<vmem>>, vector<1x8x4xf32>
    %21 = vector.shape_cast %20 : vector<1x8x4xf32> to vector<8x4xf32>
    %cst_12 = arith.constant dense<0.000000e+00> : vector<8x288xf32>
    %22 = tpu.matmul %21, %19, %cst_12 {dimension_numbers = #tpu.dot_dimension_numbers<[1], [0], [0], [1], [0, 0, 1, 1], [], []>} : vector<8x4xf32>, vector<4x288xf32>, vector<8x288xf32> -> vector<8x288xf32>
    %23 = arith.addf %18, %22 : vector<8x288xf32>
    %24 = vector.extract_strided_slice %12 {offsets = [0, 2], sizes = [4, 288], strides = [1, 1]} : vector<4x342xf32> to vector<4x288xf32>
    %c2 = arith.constant 2 : index
    %c0_13 = arith.constant 0 : index
    %c0_14 = arith.constant 0 : index
    %25 = vector.load %arg2[%c2, %c0_13, %c0_14] : memref<9x8x4xf32, #tpu.memory_space<vmem>>, vector<1x8x4xf32>
    %26 = vector.shape_cast %25 : vector<1x8x4xf32> to vector<8x4xf32>
    %cst_15 = arith.constant dense<0.000000e+00> : vector<8x288xf32>
    %27 = tpu.matmul %26, %24, %cst_15 {dimension_numbers = #tpu.dot_dimension_numbers<[1], [0], [0], [1], [0, 0, 1, 1], [], []>} : vector<8x4xf32>, vector<4x288xf32>, vector<8x288xf32> -> vector<8x288xf32>
    %28 = arith.addf %23, %27 : vector<8x288xf32>
    %29 = vector.extract_strided_slice %12 {offsets = [0, 18], sizes = [4, 288], strides = [1, 1]} : vector<4x342xf32> to vector<4x288xf32>
    %c3 = arith.constant 3 : index
    %c0_16 = arith.constant 0 : index
    %c0_17 = arith.constant 0 : index
    %30 = vector.load %arg2[%c3, %c0_16, %c0_17] : memref<9x8x4xf32, #tpu.memory_space<vmem>>, vector<1x8x4xf32>
    %31 = vector.shape_cast %30 : vector<1x8x4xf32> to vector<8x4xf32>
    %cst_18 = arith.constant dense<0.000000e+00> : vector<8x288xf32>
    %32 = tpu.matmul %31, %29, %cst_18 {dimension_numbers = #tpu.dot_dimension_numbers<[1], [0], [0], [1], [0, 0, 1, 1], [], []>} : vector<8x4xf32>, vector<4x288xf32>, vector<8x288xf32> -> vector<8x288xf32>
    %33 = arith.addf %28, %32 : vector<8x288xf32>
    %34 = vector.extract_strided_slice %12 {offsets = [0, 19], sizes = [4, 288], strides = [1, 1]} : vector<4x342xf32> to vector<4x288xf32>
    %c4 = arith.constant 4 : index
    %c0_19 = arith.constant 0 : index
    %c0_20 = arith.constant 0 : index
    %35 = vector.load %arg2[%c4, %c0_19, %c0_20] : memref<9x8x4xf32, #tpu.memory_space<vmem>>, vector<1x8x4xf32>
    %36 = vector.shape_cast %35 : vector<1x8x4xf32> to vector<8x4xf32>
    %cst_21 = arith.constant dense<0.000000e+00> : vector<8x288xf32>
    %37 = tpu.matmul %36, %34, %cst_21 {dimension_numbers = #tpu.dot_dimension_numbers<[1], [0], [0], [1], [0, 0, 1, 1], [], []>} : vector<8x4xf32>, vector<4x288xf32>, vector<8x288xf32> -> vector<8x288xf32>
    %38 = arith.addf %33, %37 : vector<8x288xf32>
    %39 = vector.extract_strided_slice %12 {offsets = [0, 20], sizes = [4, 288], strides = [1, 1]} : vector<4x342xf32> to vector<4x288xf32>
    %c5 = arith.constant 5 : index
    %c0_22 = arith.constant 0 : index
    %c0_23 = arith.constant 0 : index
    %40 = vector.load %arg2[%c5, %c0_22, %c0_23] : memref<9x8x4xf32, #tpu.memory_space<vmem>>, vector<1x8x4xf32>
    %41 = vector.shape_cast %40 : vector<1x8x4xf32> to vector<8x4xf32>
    %cst_24 = arith.constant dense<0.000000e+00> : vector<8x288xf32>
    %42 = tpu.matmul %41, %39, %cst_24 {dimension_numbers = #tpu.dot_dimension_numbers<[1], [0], [0], [1], [0, 0, 1, 1], [], []>} : vector<8x4xf32>, vector<4x288xf32>, vector<8x288xf32> -> vector<8x288xf32>
    %43 = arith.addf %38, %42 : vector<8x288xf32>
    %44 = vector.extract_strided_slice %12 {offsets = [0, 36], sizes = [4, 288], strides = [1, 1]} : vector<4x342xf32> to vector<4x288xf32>
    %c6 = arith.constant 6 : index
    %c0_25 = arith.constant 0 : index
    %c0_26 = arith.constant 0 : index
    %45 = vector.load %arg2[%c6, %c0_25, %c0_26] : memref<9x8x4xf32, #tpu.memory_space<vmem>>, vector<1x8x4xf32>
    %46 = vector.shape_cast %45 : vector<1x8x4xf32> to vector<8x4xf32>
    %cst_27 = arith.constant dense<0.000000e+00> : vector<8x288xf32>
    %47 = tpu.matmul %46, %44, %cst_27 {dimension_numbers = #tpu.dot_dimension_numbers<[1], [0], [0], [1], [0, 0, 1, 1], [], []>} : vector<8x4xf32>, vector<4x288xf32>, vector<8x288xf32> -> vector<8x288xf32>
    %48 = arith.addf %43, %47 : vector<8x288xf32>
    %49 = vector.extract_strided_slice %12 {offsets = [0, 37], sizes = [4, 288], strides = [1, 1]} : vector<4x342xf32> to vector<4x288xf32>
    %c7 = arith.constant 7 : index
    %c0_28 = arith.constant 0 : index
    %c0_29 = arith.constant 0 : index
    %50 = vector.load %arg2[%c7, %c0_28, %c0_29] : memref<9x8x4xf32, #tpu.memory_space<vmem>>, vector<1x8x4xf32>
    %51 = vector.shape_cast %50 : vector<1x8x4xf32> to vector<8x4xf32>
    %cst_30 = arith.constant dense<0.000000e+00> : vector<8x288xf32>
    %52 = tpu.matmul %51, %49, %cst_30 {dimension_numbers = #tpu.dot_dimension_numbers<[1], [0], [0], [1], [0, 0, 1, 1], [], []>} : vector<8x4xf32>, vector<4x288xf32>, vector<8x288xf32> -> vector<8x288xf32>
    %53 = arith.addf %48, %52 : vector<8x288xf32>
    %54 = vector.extract_strided_slice %12 {offsets = [0, 38], sizes = [4, 288], strides = [1, 1]} : vector<4x342xf32> to vector<4x288xf32>
    %c8 = arith.constant 8 : index
    %c0_31 = arith.constant 0 : index
    %c0_32 = arith.constant 0 : index
    %55 = vector.load %arg2[%c8, %c0_31, %c0_32] : memref<9x8x4xf32, #tpu.memory_space<vmem>>, vector<1x8x4xf32>
    %56 = vector.shape_cast %55 : vector<1x8x4xf32> to vector<8x4xf32>
    %cst_33 = arith.constant dense<0.000000e+00> : vector<8x288xf32>
    %57 = tpu.matmul %56, %54, %cst_33 {dimension_numbers = #tpu.dot_dimension_numbers<[1], [0], [0], [1], [0, 0, 1, 1], [], []>} : vector<8x4xf32>, vector<4x288xf32>, vector<8x288xf32> -> vector<8x288xf32>
    %58 = arith.addf %53, %57 : vector<8x288xf32>
    %59 = vector.shape_cast %58 : vector<8x288xf32> to vector<8x16x18xf32>
    %60 = vector.extract_strided_slice %59 {offsets = [0, 0, 0], sizes = [8, 16, 16], strides = [1, 1, 1]} : vector<8x16x18xf32> to vector<8x16x16xf32>
    %61 = vector.shape_cast %60 : vector<8x16x16xf32> to vector<8x256xf32>
    %62 = arith.addf %61, %2 : vector<8x256xf32>
    %63 = arith.index_cast %c0_i32 : i32 to index
    %c0_34 = arith.constant 0 : index
    %c0_35 = arith.constant 0 : index
    %64 = vector.load %arg4[%63, %c0_34, %c0_35] : memref<1x8x256xf32, #tpu.memory_space<vmem>>, vector<1x8x256xf32>
    %65 = vector.shape_cast %64 : vector<1x8x256xf32> to vector<8x256xf32>
    %66 = vector.shape_cast %62 : vector<8x256xf32> to vector<1x8x256xf32>
    tpu.vector_store %arg4[%63, %c0_34, %c0_35], %66 {strides = array<i32>} : memref<1x8x256xf32, #tpu.memory_space<vmem>>, vector<1x8x256xf32>,
    %c1_i32 = arith.constant 1 : i32
    return
  }
  func.func @transform_0(%arg0: i32) -> (i32, i32, i32) {
    %c0_i32 = arith.constant 0 : i32
    %c0_i32_0 = arith.constant 0 : i32
    %c0_i32_1 = arith.constant 0 : i32
    return %arg0, %c0_i32, %c0_i32_0 : i32, i32, i32
  }
  func.func @transform_1(%arg0: i32) -> (i32, i32, i32) {
    %c0_i32 = arith.constant 0 : i32
    %c0_i32_0 = arith.constant 0 : i32
    %c0_i32_1 = arith.constant 0 : i32
    %c0_i32_2 = arith.constant 0 : i32
    return %c0_i32, %c0_i32_0, %c0_i32_1 : i32, i32, i32
  }
  func.func @transform_2(%arg0: i32) -> (i32, i32) {
    %c0_i32 = arith.constant 0 : i32
    %c0_i32_0 = arith.constant 0 : i32
    %c0_i32_1 = arith.constant 0 : i32
    return %c0_i32, %c0_i32_0 : i32, i32
  }
  func.func @transform_3(%arg0: i32) -> (i32, i32, i32) {
    %c0_i32 = arith.constant 0 : i32
    %c0_i32_0 = arith.constant 0 : i32
    %c0_i32_1 = arith.constant 0 : i32
    return %arg0, %c0_i32, %c0_i32_0 : i32, i32, i32
  }
}

</mosaic_0001>

<llo_original>
// kernel: tpu_custom_call.1
$region0: #{tpu_custom_call.1}
  #allocation0 [shape = 'u32[]', space=smem, size = 0x4, offset = 0x4, fixed_abs, tag = 'smem constant byte address 0x4 - core index']
  #allocation1 [shape = 'u32[144,128]{1,0:T(1,128)}', space=vmem, size = 0x12000, scoped, tag = 'internal scratch']
  %s0 = inlined_call_operand.vmem [shape: f32[2,4,256], index: 0, kind: input, shape index: {}]
  %s1 = inlined_call_operand.vmem [shape: f32[9,8,4], index: 1, kind: input, shape index: {}]
  %s2 = inlined_call_operand.vmem [shape: f32[8,1], index: 2, kind: input, shape index: {}]
  %s3 = inlined_call_operand.hbm [shape: f32[2,8,256], index: 3, kind: output, shape index: {}]
  %s4 = sld [smem:[#allocation0]]
  $region45: #{tpu_custom_call.1} parent=0
    _
  %s6 = ssub.s32 1, %s4
  %s7 = scalar_select 0, %s6, %s4
  $region1: #{tpu_custom_call.1} parent=0
    #allocation2 [shape = 'u8[16384]{0}', space=vmem, size = 0x4000, scoped, tag = 'output window, operand 0']
    #allocation3 [shape = 's32[2]{0}', space=sflag, size = 0x8, scoped, tag = 'scoped memory for tpu_custom_call.1']
    %8 = vsyncpa [#allocation3], 0
    %s9 = scalar_lea.sflag [#allocation3], 1
    %10 = vsyncpa %s9, 0
    loop: start=0, step=1, limit=4
    $region2: #{tpu_custom_call.1} parent=1 // loop_pre_header
      _
    $region3: #{tpu_custom_call.1} parent=1 // loop_header
      %s12 = sphi 0, %s16
      %p13 = scmp.ge.s32.totalorder %s12, 4
      %s22 = sphi 0, %s24
      %s25 = sphi 0, %s22
      %s26 = sphi 0, %s25
      %s42 = sphi 0, %s26
      %s46 = sphi 0, %s46
      %s48 = sphi 0, %s46
      %s49 = sphi 0, %s48
      %s63 = sphi 0, %s49
      %s67 = sphi 0, %s67
      %s69 = sphi 0, %s67
      %s70 = sphi 0, %s69
      %s84 = sphi 0, %s70
      %s90 = sphi 0, %s92
      %s93 = sphi 0, %s90
      %s94 = sphi 0, %s93
      %s110 = sphi 0, %s94
    $region4: #{tpu_custom_call.1} parent=1 // loop_header_branch
      %15 = sbr.rel (%p13) target = $region8
    $region5: #{tpu_custom_call.1} parent=1 // loop_body
      %s17 = ssub.s32 %s12, 1
      %s18 = ssub.s32 %s12, 2
      %s19 = sadd.s32 %s12, 1
      %s20 = ssub.s32 %s12, %s19
      %p21 = scmp.eq.s32.totalorder %s20, 0
      %s23 = sadd.s32 %s22, 1
      %s24 = scalar_select %p21, %s22, %s23
      %p27 = pneg %p21
      %p28 = scmp.eq.s32.totalorder %s12, 1
      %p29 = por %p27, %p28
      %p30 = scmp.ne.s32.totalorder %s22, %s25
      %p31 = scmp.eq.s32.totalorder %s12, 0
      %p32 = por %p30, %p31
      %p33 = scmp.ne.s32.totalorder %s22, %s25
      %p34 = scmp.eq.s32.totalorder %s17, 1
      %p35 = por %p33, %p34
      %p36 = scmp.ne.s32.totalorder %s25, %s26
      %p37 = scmp.eq.s32.totalorder %s17, 0
      %p38 = por %p36, %p37
      %p39 = scmp.ne.s32.totalorder %s25, %s26
      %p40 = scmp.eq.s32.totalorder %s18, 1
      %p41 = por %p39, %p40
      %p43 = scmp.ne.s32.totalorder %s26, %s42
      %p44 = scmp.eq.s32.totalorder %s18, 0
      %p45 = por %p43, %p44
      %s47 = sadd.s32 %s46, 1
      %p50 = scmp.eq.s32.totalorder %s12, 1
      %p51 = scmp.ne.s32.totalorder %s46, %s48
      %p52 = scmp.eq.s32.totalorder %s12, 0
      %p53 = por %p51, %p52
      %p54 = scmp.ne.s32.totalorder %s46, %s48
      %p55 = scmp.eq.s32.totalorder %s17, 1
      %p56 = por %p54, %p55
      %p57 = scmp.ne.s32.totalorder %s48, %s49
      %p58 = scmp.eq.s32.totalorder %s17, 0
      %p59 = por %p57, %p58
      %p60 = scmp.ne.s32.totalorder %s48, %s49
      %p61 = scmp.eq.s32.totalorder %s18, 1
      %p62 = por %p60, %p61
      %p64 = scmp.ne.s32.totalorder %s49, %s63
      %p65 = scmp.eq.s32.totalorder %s18, 0
      %p66 = por %p64, %p65
      %s68 = sadd.s32 %s67, 1
      %p71 = scmp.eq.s32.totalorder %s12, 1
      %p72 = scmp.ne.s32.totalorder %s67, %s69
      %p73 = scmp.eq.s32.totalorder %s12, 0
      %p74 = por %p72, %p73
      %p75 = scmp.ne.s32.totalorder %s67, %s69
      %p76 = scmp.eq.s32.totalorder %s17, 1
      %p77 = por %p75, %p76
      %p78 = scmp.ne.s32.totalorder %s69, %s70
      %p79 = scmp.eq.s32.totalorder %s17, 0
      %p80 = por %p78, %p79
      %p81 = scmp.ne.s32.totalorder %s69, %s70
      %p82 = scmp.eq.s32.totalorder %s18, 1
      %p83 = por %p81, %p82
      %p85 = scmp.ne.s32.totalorder %s70, %s84
      %p86 = scmp.eq.s32.totalorder %s18, 0
      %p87 = por %p85, %p86
      %s88 = ssub.s32 %s12, %s19
      %p89 = scmp.eq.s32.totalorder %s88, 0
      %s91 = sadd.s32 %s90, 1
      %s92 = scalar_select %p89, %s90, %s91
      %p95 = pneg %p89
      %p96 = scmp.eq.s32.totalorder %s12, 1
      %p97 = por %p95, %p96
      %p98 = scmp.ne.s32.totalorder %s90, %s93
      %p99 = scmp.eq.s32.totalorder %s12, 0
      %p100 = por %p98, %p99
      %p101 = scmp.ne.s32.totalorder %s90, %s93
      %p102 = scmp.eq.s32.totalorder %s17, 1
      %p103 = por %p101, %p102
      %p104 = scmp.ne.s32.totalorder %s93, %s94
      %p105 = scmp.eq.s32.totalorder %s17, 0
      %p106 = por %p104, %p105
      %p107 = scmp.ne.s32.totalorder %s93, %s94
      %p108 = scmp.eq.s32.totalorder %s18, 1
      %p109 = por %p107, %p108
      %p111 = scmp.ne.s32.totalorder %s94, %s110
      %p112 = scmp.eq.s32.totalorder %s18, 0
      %p113 = por %p111, %p112
      %p114 = scmp.le.s32.totalorder 1, %s12
      %p115 = scmp.lt.s32.totalorder %s12, 3
      %p116 = pnand %p114, %p115
      %p117 = pneg %p116
      // Predicated region
      $region9: #{tpu_custom_call.1} parent=5 // pred_check
        _
      $region10: #{tpu_custom_call.1} parent=5 // pred_check_branch
        %119 = sbr.rel (%p116) target = $region12
      $region11: #{tpu_custom_call.1} parent=5 // pred_region
        %s120 = ssub.s32 %s12, 1
        // Predicated region
        $region13: #{tpu_custom_call.1} parent=11 // pred_check
          %p121 = pneg %p59
        $region14: #{tpu_custom_call.1} parent=11 // pred_check_branch
          %123 = sbr.rel (%p121) target = $region16
        $region15: #{tpu_custom_call.1} parent=11 // pred_region
          _
        $region16: #{tpu_custom_call.1} parent=11 // pred_fallthru
          _
        // Predicated region
        $region17: #{tpu_custom_call.1} parent=11 // pred_check
          %p124 = pneg %p80
        $region18: #{tpu_custom_call.1} parent=11 // pred_check_branch
          %126 = sbr.rel (%p124) target = $region20
        $region19: #{tpu_custom_call.1} parent=11 // pred_region
          _
        $region20: #{tpu_custom_call.1} parent=11 // pred_fallthru
          _
      $region12: #{tpu_custom_call.1} parent=5 // pred_fallthru
        _
      %p127 = scmp.lt.s32.totalorder %s12, 2
      // Predicated region
      $region21: #{tpu_custom_call.1} parent=5 // pred_check
        %p128 = pneg %p127
      $region22: #{tpu_custom_call.1} parent=5 // pred_check_branch
        %130 = sbr.rel (%p128) target = $region24
      $region23: #{tpu_custom_call.1} parent=5 // pred_region
        // Predicated region
        $region25: #{tpu_custom_call.1} parent=23 // pred_check
          %p131 = pneg %p32
        $region26: #{tpu_custom_call.1} parent=23 // pred_check_branch
          %133 = sbr.rel (%p131) target = $region28
        $region27: #{tpu_custom_call.1} parent=23 // pred_region
          %p134 = scmp.lt.s32.totalorder %s12, 1
          %s135 = scalar_select %p134, %s12, 1
          %s136 = smul.addr %s135, 2
          %s137 = smul.addr %s136, 4
          %s138 = scalar_lea.vmem %s0, %s137
        $region28: #{tpu_custom_call.1} parent=23 // pred_fallthru
          _
      $region24: #{tpu_custom_call.1} parent=5 // pred_fallthru
        _
      %p139 = scmp.le.s32.totalorder 1, %s12
      %p140 = scmp.lt.s32.totalorder %s12, 3
      %p141 = pnand %p139, %p140
      %p142 = pneg %p141
      // Predicated region
      $region29: #{tpu_custom_call.1} parent=5 // pred_check
        _
      $region30: #{tpu_custom_call.1} parent=5 // pred_check_branch
        %144 = sbr.rel (%p141) target = $region32
      $region31: #{tpu_custom_call.1} parent=5 // pred_region
        %s145 = ssub.s32 %s12, 1
        %p146 = scmp.lt.s32.totalorder %s17, 1
        %s147 = scalar_select %p146, %s17, 1
        %s148 = smul.addr %s147, 2
        %s149 = smul.addr %s148, 4
        %s150 = scalar_lea.vmem %s0, %s149
        %p151 = pneg %p38
        %p152 = pneg %p35
        %p153 = pneg %p59
        %p154 = pneg %p56
        %p155 = pneg %p80
        %p156 = pneg %p77
        %p157 = pneg %p106
        %p158 = pneg %p103
        %s159 = sand.u32 %s93, 1
        %s160 = scalar_lea.sflag [#allocation3], %s159
        %s161 = sand.u32 %s93, 1
        %s162 = smul.addr %s161, 16
        %s163 = scalar_lea.vmem [#allocation2], %s162
        %p164 = scmp.lt.s32.totalorder %s17, 1
        %s165 = scalar_select %p164, %s17, 1
        %s166 = smul.addr %s165, 2
        %s167 = smul.addr %s166, 4
        %s168 = scalar_lea.vmem %s0, %s167
        %v169 = vld [vmem:[%s2] sm:$0xff]
        %171 = vset.pattern.permute.xlu0 0
        %172 = vperm.xlu0 %171, %v169
        %v173 = vpop.permute.xlu0 %172
        %v175 = vld [vmem:[%s168] sm:$0xff]
        %v177 = vrot.slane %v175, 4
        %179 = vrot.lane.b32.xlu0 %v175, 112
        %v180 = vpop.permute.xlu0 %179
        %v181 = vrot.slane %v180, 4
        %183 = vrot.lane.b32.xlu0 %v175, 96
        %v184 = vpop.permute.xlu0 %183
        %v185 = vrot.slane %v184, 4
        %187 = vrot.lane.b32.xlu0 %v175, 80
        %v188 = vpop.permute.xlu0 %187
        %v189 = vrot.slane %v188, 4
        %191 = vrot.lane.b32.xlu0 %v175, 64
        %v192 = vpop.permute.xlu0 %191
        %v193 = vrot.slane %v192, 4
        %195 = vrot.lane.b32.xlu0 %v175, 48
        %v196 = vpop.permute.xlu0 %195
        %v197 = vrot.slane %v196, 4
        %199 = vrot.lane.b32.xlu0 %v175, 32
        %v200 = vpop.permute.xlu0 %199
        %v201 = vrot.slane %v200, 4
        %203 = vrot.lane.b32.xlu0 %v175, 16
        %v204 = vpop.permute.xlu0 %203
        %v205 = vrot.slane %v204, 4
        %v214 = vcombine.low %v175, %v184
        %v216 = vunpack.c.l.s4 1983009808
        %v217 = vunpack.c.0.s8 %v216
        %v218 = vlaneseq
        %v219 = vshrl.u32 %v218, 7
        %v220 = vsub.s32 %v217, %v219
        %v221 = vrot.slane %v214, %v220
        %v222 = vcombine.low %v180, %v188
        %v224 = vunpack.c.l.s4 1983009808
        %v225 = vunpack.c.0.s8 %v224
        %v226 = vlaneseq
        %v227 = vshrl.u32 %v226, 7
        %v228 = vsub.s32 %v225, %v227
        %v229 = vrot.slane %v222, %v228
        %v230 = vcombine.low %v221, %v229
        %v231 = vcombine.high %v221, %v229
        %v233 = vunpack.c.l.s4 1934713408
        %v234 = vunpack.c.0.s8 %v233
        %v235 = vlaneseq
        %v236 = vshrl.u32 %v235, 7
        %v237 = vsub.s32 %v234, %v236
        %v238 = vrot.slane %v230, %v237
        %v240 = vunpack.c.l.s4 1934713408
        %v241 = vunpack.c.0.s8 %v240
        %v242 = vlaneseq
        %v243 = vshrl.u32 %v242, 7
        %v244 = vsub.s32 %v241, %v243
        %v245 = vrot.slane %v231, %v244
        %v246 = vcombine.high %v238, 0.0
        %v247 = vcombine.high %v245, 0.0
        %v248 = vcombine.low %v192, %v200
        %v250 = vunpack.c.l.s4 1983009808
        %v251 = vunpack.c.0.s8 %v250
        %v252 = vlaneseq
        %v253 = vshrl.u32 %v252, 7
        %v254 = vsub.s32 %v251, %v253
        %v255 = vrot.slane %v248, %v254
        %v256 = vcombine.low %v196, %v204
        %v258 = vunpack.c.l.s4 1983009808
        %v259 = vunpack.c.0.s8 %v258
        %v260 = vlaneseq
        %v261 = vshrl.u32 %v260, 7
        %v262 = vsub.s32 %v259, %v261
        %v263 = vrot.slane %v256, %v262
        %v264 = vcombine.low %v255, %v263
        %v265 = vcombine.high %v255, %v263
        %v267 = vunpack.c.l.s4 1934713408
        %v268 = vunpack.c.0.s8 %v267
        %v269 = vlaneseq
        %v270 = vshrl.u32 %v269, 7
        %v271 = vsub.s32 %v268, %v270
        %v272 = vrot.slane %v264, %v271
        %v274 = vunpack.c.l.s4 1934713408
        %v275 = vunpack.c.0.s8 %v274
        %v276 = vlaneseq
        %v277 = vshrl.u32 %v276, 7
        %v278 = vsub.s32 %v275, %v277
        %v279 = vrot.slane %v265, %v278
        %v280 = vcombine.high %v272, 0.0
        %v281 = vcombine.high %v279, 0.0
        %v282 = vcombine.low %v177, %v185
        %v284 = vunpack.c.l.s4 1983009808
        %v285 = vunpack.c.0.s8 %v284
        %v286 = vlaneseq
        %v287 = vshrl.u32 %v286, 7
        %v288 = vsub.s32 %v285, %v287
        %v289 = vrot.slane %v282, %v288
        %v290 = vcombine.low %v181, %v189
        %v292 = vunpack.c.l.s4 1983009808
        %v293 = vunpack.c.0.s8 %v292
        %v294 = vlaneseq
        %v295 = vshrl.u32 %v294, 7
        %v296 = vsub.s32 %v293, %v295
        %v297 = vrot.slane %v290, %v296
        %v298 = vcombine.low %v289, %v297
        %v299 = vcombine.high %v289, %v297
        %v301 = vunpack.c.l.s4 1934713408
        %v302 = vunpack.c.0.s8 %v301
        %v303 = vlaneseq
        %v304 = vshrl.u32 %v303, 7
        %v305 = vsub.s32 %v302, %v304
        %v306 = vrot.slane %v298, %v305
        %v308 = vunpack.c.l.s4 1934713408
        %v309 = vunpack.c.0.s8 %v308
        %v310 = vlaneseq
        %v311 = vshrl.u32 %v310, 7
        %v312 = vsub.s32 %v309, %v311
        %v313 = vrot.slane %v299, %v312
        %v314 = vcombine.high %v306, 0.0
        %v315 = vcombine.high %v313, 0.0
        %v316 = vcombine.low %v193, %v201
        %v318 = vunpack.c.l.s4 1983009808
        %v319 = vunpack.c.0.s8 %v318
        %v320 = vlaneseq
        %v321 = vshrl.u32 %v320, 7
        %v322 = vsub.s32 %v319, %v321
        %v323 = vrot.slane %v316, %v322
        %v324 = vcombine.low %v197, %v205
        %v326 = vunpack.c.l.s4 1983009808
        %v327 = vunpack.c.0.s8 %v326
        %v328 = vlaneseq
        %v329 = vshrl.u32 %v328, 7
        %v330 = vsub.s32 %v327, %v329
        %v331 = vrot.slane %v324, %v330
        %v332 = vcombine.low %v323, %v331
        %v333 = vcombine.high %v323, %v331
        %v335 = vunpack.c.l.s4 1934713408
        %v336 = vunpack.c.0.s8 %v335
        %v337 = vlaneseq
        %v338 = vshrl.u32 %v337, 7
        %v339 = vsub.s32 %v336, %v338
        %v340 = vrot.slane %v332, %v339
        %v342 = vunpack.c.l.s4 1934713408
        %v343 = vunpack.c.0.s8 %v342
        %v344 = vlaneseq
        %v345 = vshrl.u32 %v344, 7
        %v346 = vsub.s32 %v343, %v345
        %v347 = vrot.slane %v333, %v346
        %v348 = vcombine.high %v340, 0.0
        %v349 = vcombine.high %v347, 0.0
        %v366 = vcombine.low %v238, %v272
        %v367 = vcombine.low %v306, %v340
        %v368 = vcombine.low %v246, %v280
        %v369 = vcombine.low %v314, %v348
        %v370 = vcombine.low %v245, %v279
        %v371 = vcombine.low %v313, %v347
        %v372 = vcombine.low %v247, %v281
        %v373 = vcombine.low %v315, %v349
        %374 = vrot.lane.b32.xlu0 %v366, 1
        %v375 = vpop.permute.xlu0 %374
        %376 = vrot.lane.b32.xlu0 %v367, 1
        %v377 = vpop.permute.xlu0 %376
        %378 = vrot.lane.b32.xlu0 %v368, 1
        %v379 = vpop.permute.xlu0 %378
        %380 = vrot.lane.b32.xlu0 %v369, 1
        %v381 = vpop.permute.xlu0 %380
        %382 = vrot.lane.b32.xlu0 %v370, 1
        %v383 = vpop.permute.xlu0 %382
        %384 = vrot.lane.b32.xlu0 %v371, 1
        %v385 = vpop.permute.xlu0 %384
        %386 = vrot.lane.b32.xlu0 %v372, 1
        %v387 = vpop.permute.xlu0 %386
        %388 = vrot.lane.b32.xlu0 %v373, 1
        %v389 = vpop.permute.xlu0 %388
        %vm398 = vcmask 7168
        %v399 = vsel %vm398, 0.0, %v375
        %v400 = vsel %vm398, 0.0, %v377
        %v401 = vsel %vm398, 0.0, %v379
        %v402 = vsel %vm398, 0.0, %v381
        %v403 = vsel %vm398, 0.0, %v383
        %v404 = vsel %vm398, 0.0, %v385
        %v405 = vsel %vm398, 0.0, %v387
        %v406 = vsel %vm398, 0.0, %v389
        %vm407 = vcmask 138240
        %v408 = vsel %vm407, %v399, 0.0
        %v409 = vsel %vm407, %v400, 0.0
        %v410 = vsel %vm407, %v401, 0.0
        %v411 = vsel %vm407, %v402, 0.0
        %v412 = vsel %vm407, %v403, 0.0
        %v413 = vsel %vm407, %v404, 0.0
        %v414 = vsel %vm407, %v405, 0.0
        %v415 = vsel %vm407, %v406, 0.0
        %vm424 = vcmask 1040384
        %v425 = vrot.slane %v408, 7
        %v426 = vrot.slane %v409, 7
        %v427 = vsel %vm424, %v425, %v426
        %v428 = vrot.slane %v410, 7
        %v429 = vrot.slane %v411, 7
        %v430 = vsel %vm424, %v428, %v429
        %v431 = vrot.slane %v412, 7
        %v432 = vrot.slane %v413, 7
        %v433 = vsel %vm424, %v431, %v432
        %v434 = vrot.slane %v414, 7
        %v435 = vrot.slane %v415, 7
        %v436 = vsel %vm424, %v434, %v435
        %v449 = vsel %vm424, 0.0, %v425
        %v450 = vsel %vm424, 0.0, %v428
        %v451 = vsel %vm424, 0.0, %v431
        %v452 = vsel %vm424, 0.0, %v434
        %v453 = vsel %vm424, %v426, 0.0
        %v454 = vsel %vm424, %v429, 0.0
        %v455 = vsel %vm424, %v432, 0.0
        %v456 = vsel %vm424, %v435, 0.0
        %v457 = vcombine.low %v449, %v451
        %v458 = vcombine.high %v449, %v451
        %v460 = vunpack.c.l.s4 1983009808
        %v461 = vunpack.c.0.s8 %v460
        %v462 = vlaneseq
        %v463 = vshrl.u32 %v462, 7
        %v464 = vsub.s32 %v461, %v463
        %v465 = vrot.slane %v457, %v464
        %v467 = vunpack.c.l.s4 1983009808
        %v468 = vunpack.c.0.s8 %v467
        %v469 = vlaneseq
        %v470 = vshrl.u32 %v469, 7
        %v471 = vsub.s32 %v468, %v470
        %v472 = vrot.slane %v458, %v471
        %v473 = vcombine.low %v450, %v452
        %v474 = vcombine.high %v450, %v452
        %v476 = vunpack.c.l.s4 1983009808
        %v477 = vunpack.c.0.s8 %v476
        %v478 = vlaneseq
        %v479 = vshrl.u32 %v478, 7
        %v480 = vsub.s32 %v477, %v479
        %v481 = vrot.slane %v473, %v480
        %v483 = vunpack.c.l.s4 1983009808
        %v484 = vunpack.c.0.s8 %v483
        %v485 = vlaneseq
        %v486 = vshrl.u32 %v485, 7
        %v487 = vsub.s32 %v484, %v486
        %v488 = vrot.slane %v474, %v487
        %v489 = vcombine.low %v465, %v481
        %v490 = vcombine.high %v465, %v481
        %v492 = vunpack.c.l.s4 1934713408
        %v493 = vunpack.c.0.s8 %v492
        %v494 = vlaneseq
        %v495 = vshrl.u32 %v494, 7
        %v496 = vsub.s32 %v493, %v495
        %v497 = vrot.slane %v489, %v496
        %v499 = vunpack.c.l.s4 1934713408
        %v500 = vunpack.c.0.s8 %v499
        %v501 = vlaneseq
        %v502 = vshrl.u32 %v501, 7
        %v503 = vsub.s32 %v500, %v502
        %v504 = vrot.slane %v490, %v503
        %v505 = vcombine.low %v472, %v488
        %v506 = vcombine.high %v472, %v488
        %v508 = vunpack.c.l.s4 1934713408
        %v509 = vunpack.c.0.s8 %v508
        %v510 = vlaneseq
        %v511 = vshrl.u32 %v510, 7
        %v512 = vsub.s32 %v509, %v511
        %v513 = vrot.slane %v505, %v512
        %v515 = vunpack.c.l.s4 1934713408
        %v516 = vunpack.c.0.s8 %v515
        %v517 = vlaneseq
        %v518 = vshrl.u32 %v517, 7
        %v519 = vsub.s32 %v516, %v518
        %v520 = vrot.slane %v506, %v519
        %v521 = vcombine.high %v497, 0.0
        %v522 = vcombine.high %v504, 0.0
        %v523 = vcombine.high %v513, 0.0
        %v524 = vcombine.high %v520, 0.0
        %v525 = vcombine.low %v427, %v433
        %v526 = vcombine.high %v427, %v433
        %v528 = vunpack.c.l.s4 1983009808
        %v529 = vunpack.c.0.s8 %v528
        %v530 = vlaneseq
        %v531 = vshrl.u32 %v530, 7
        %v532 = vsub.s32 %v529, %v531
        %v533 = vrot.slane %v525, %v532
        %v535 = vunpack.c.l.s4 1983009808
        %v536 = vunpack.c.0.s8 %v535
        %v537 = vlaneseq
        %v538 = vshrl.u32 %v537, 7
        %v539 = vsub.s32 %v536, %v538
        %v540 = vrot.slane %v526, %v539
        %v541 = vcombine.low %v430, %v436
        %v542 = vcombine.high %v430, %v436
        %v544 = vunpack.c.l.s4 1983009808
        %v545 = vunpack.c.0.s8 %v544
        %v546 = vlaneseq
        %v547 = vshrl.u32 %v546, 7
        %v548 = vsub.s32 %v545, %v547
        %v549 = vrot.slane %v541, %v548
        %v551 = vunpack.c.l.s4 1983009808
        %v552 = vunpack.c.0.s8 %v551
        %v553 = vlaneseq
        %v554 = vshrl.u32 %v553, 7
        %v555 = vsub.s32 %v552, %v554
        %v556 = vrot.slane %v542, %v555
        %v557 = vcombine.low %v533, %v549
        %v558 = vcombine.high %v533, %v549
        %v560 = vunpack.c.l.s4 1934713408
        %v561 = vunpack.c.0.s8 %v560
        %v562 = vlaneseq
        %v563 = vshrl.u32 %v562, 7
        %v564 = vsub.s32 %v561, %v563
        %v565 = vrot.slane %v557, %v564
        %v567 = vunpack.c.l.s4 1934713408
        %v568 = vunpack.c.0.s8 %v567
        %v569 = vlaneseq
        %v570 = vshrl.u32 %v569, 7
        %v571 = vsub.s32 %v568, %v570
        %v572 = vrot.slane %v558, %v571
        %v573 = vcombine.low %v540, %v556
        %v574 = vcombine.high %v540, %v556
        %v576 = vunpack.c.l.s4 1934713408
        %v577 = vunpack.c.0.s8 %v576
        %v578 = vlaneseq
        %v579 = vshrl.u32 %v578, 7
        %v580 = vsub.s32 %v577, %v579
        %v581 = vrot.slane %v573, %v580
        %v583 = vunpack.c.l.s4 1934713408
        %v584 = vunpack.c.0.s8 %v583
        %v585 = vlaneseq
        %v586 = vshrl.u32 %v585, 7
        %v587 = vsub.s32 %v584, %v586
        %v588 = vrot.slane %v574, %v587
        %v589 = vcombine.high %v565, 0.0
        %v590 = vcombine.high %v572, 0.0
        %v591 = vcombine.high %v581, 0.0
        %v592 = vcombine.high %v588, 0.0
        %v593 = vcombine.low %v453, %v455
        %v595 = vunpack.c.l.s4 1983009808
        %v596 = vunpack.c.0.s8 %v595
        %v597 = vlaneseq
        %v598 = vshrl.u32 %v597, 7
        %v599 = vsub.s32 %v596, %v598
        %v600 = vrot.slane %v593, %v599
        %v601 = vcombine.low %v454, %v456
        %v603 = vunpack.c.l.s4 1983009808
        %v604 = vunpack.c.0.s8 %v603
        %v605 = vlaneseq
        %v606 = vshrl.u32 %v605, 7
        %v607 = vsub.s32 %v604, %v606
        %v608 = vrot.slane %v601, %v607
        %v609 = vcombine.low %v600, %v608
        %v610 = vcombine.high %v600, %v608
        %v612 = vunpack.c.l.s4 1934713408
        %v613 = vunpack.c.0.s8 %v612
        %v614 = vlaneseq
        %v615 = vshrl.u32 %v614, 7
        %v616 = vsub.s32 %v613, %v615
        %v617 = vrot.slane %v609, %v616
        %v618 = vcombine.high %v617, 0.0
        %v620 = vunpack.c.l.s4 1934713408
        %v621 = vunpack.c.0.s8 %v620
        %v622 = vlaneseq
        %v623 = vshrl.u32 %v622, 7
        %v624 = vsub.s32 %v621, %v623
        %v625 = vrot.slane %v610, %v624
        %627 = vrot.lane.b32.xlu0 %v521, 18
        %v628 = vpop.permute.xlu0 %627
        %631 = vrot.lane.b32.xlu0 %v504, 36
        %v632 = vpop.permute.xlu0 %631
        %635 = vrot.lane.b32.xlu0 %v522, 54
        %v636 = vpop.permute.xlu0 %635
        %639 = vrot.lane.b32.xlu0 %v513, 72
        %v640 = vpop.permute.xlu0 %639
        %643 = vrot.lane.b32.xlu0 %v523, 90
        %v644 = vpop.permute.xlu0 %643
        %647 = vrot.lane.b32.xlu0 %v520, 108
        %v648 = vpop.permute.xlu0 %647
        %651 = vrot.lane.b32.xlu0 %v524, 126
        %v652 = vpop.permute.xlu0 %651
        %655 = vrot.lane.b32.xlu0 %v565, 16
        %v656 = vpop.permute.xlu0 %655
        %659 = vrot.lane.b32.xlu0 %v589, 34
        %v660 = vpop.permute.xlu0 %659
        %663 = vrot.lane.b32.xlu0 %v572, 52
        %v664 = vpop.permute.xlu0 %663
        %667 = vrot.lane.b32.xlu0 %v590, 70
        %v668 = vpop.permute.xlu0 %667
        %671 = vrot.lane.b32.xlu0 %v581, 88
        %v672 = vpop.permute.xlu0 %671
        %675 = vrot.lane.b32.xlu0 %v591, 106
        %v676 = vpop.permute.xlu0 %675
        %679 = vrot.lane.b32.xlu0 %v588, 124
        %v680 = vpop.permute.xlu0 %679
        %683 = vrot.lane.b32.xlu0 %v592, 14
        %v684 = vpop.permute.xlu0 %683
        %687 = vrot.lane.b32.xlu0 %v617, 32
        %v688 = vpop.permute.xlu0 %687
        %691 = vrot.lane.b32.xlu0 %v618, 50
        %v692 = vpop.permute.xlu0 %691
        %695 = vrot.lane.b32.xlu0 %v625, 68
        %v696 = vpop.permute.xlu0 %695
        %vm698 = vcmask 146432
        %v699 = vsel %vm698, %v497, %v628
        %vm700 = vcmask 293888
        %v701 = vsel %vm700, %v699, %v632
        %vm702 = vcmask 441344
        %v703 = vsel %vm702, %v701, %v636
        %vm704 = vcmask 588800
        %v705 = vsel %vm704, %v703, %v640
        %vm706 = vcmask 736256
        %v707 = vsel %vm706, %v705, %v644
        %vm708 = vcmask 883712
        %v709 = vsel %vm708, %v707, %v648
        %vm710 = vcmask 1031168
        %v711 = vsel %vm710, %v709, %v652
        %vm712 = vcmask 130048
        %v713 = vsel %vm712, %v652, %v656
        %vm714 = vcmask 277504
        %v715 = vsel %vm714, %v713, %v660
        %vm716 = vcmask 424960
        %v717 = vsel %vm716, %v715, %v664
        %vm718 = vcmask 572416
        %v719 = vsel %vm718, %v717, %v668
        %vm720 = vcmask 719872
        %v721 = vsel %vm720, %v719, %v672
        %vm722 = vcmask 867328
        %v723 = vsel %vm722, %v721, %v676
        %vm724 = vcmask 1014784
        %v725 = vsel %vm724, %v723, %v680
        %vm726 = vcmask 113664
        %v727 = vsel %vm726, %v680, %v684
        %vm728 = vcmask 261120
        %v729 = vsel %vm728, %v727, %v688
        %vm730 = vcmask 408576
        %v731 = vsel %vm730, %v729, %v692
        %vm732 = vcmask 556032
        %v733 = vsel %vm732, %v731, %v696
        %v734 = vld [vmem:[%s1] sm:$0xff]
        %s735 = scalar_lea.vmem %s1, 8
        %v736 = vld [vmem:[%s735] sm:$0xff]
        %740 = vrot.lane.b32.xlu0 %v711, 127
        %v741 = vpop.permute.xlu0 %740
        %742 = vrot.lane.b32.xlu0 %v725, 127
        %v743 = vpop.permute.xlu0 %742
        %744 = vrot.lane.b32.xlu0 %v733, 127
        %v745 = vpop.permute.xlu0 %744
        %vm746 = vcmask 1039360
        %v747 = vsel %vm746, %v741, %v743
        %v748 = vsel %vm746, %v743, %v745
        %vm749 = vcmask 31744
        %v751 = vsel %vm749, %v736, 0
        %vm753 = vcmask 1043456
        %v754 = vsel %vm753, %v747, 0
        %v756 = vsel %vm753, %v748, 0
        %v758 = vsel %vm753, %v745, 0
        %760 = vmatprep.subr.mxu0 %v756
        %761 = vmatpush1.msra.mxu0 %v754
        %762 = vmatprep.subr.mxu0 0.0
        %763 = vmatpush1.msra.mxu0 0.0
        %764 = vmatprep.subr.mxu0 0.0
        %765 = vmatpush1.msra.mxu0 0.0
        %766 = vmatprep.subr.mxu0 0.0
        %767 = vmatpush1.msra.mxu0 0.0
        %768 = vmatprep.subr.mxu0 0.0
        %769 = vmatpush1.msra.mxu0 0.0
        %770 = vmatprep.subr.mxu0 0.0
        %771 = vmatpush1.msra.mxu0 0.0
        %772 = vmatprep.subr.mxu0 0.0
        %773 = vmatpush1.msra.mxu0 0.0
        %774 = vmatprep.subr.mxu0 0.0
        %775 = vmatpush1.msra.mxu0 0.0
        %776 = vmatprep.subr.mxu0 0.0
        %777 = vmatpush1.msra.mxu0 0.0
        %778 = vmatprep.subr.mxu0 0.0
        %779 = vmatpush1.msra.mxu0 0.0
        %780 = vmatprep.subr.mxu0 0.0
        %781 = vmatpush1.msra.mxu0 0.0
        %782 = vmatprep.subr.mxu0 0.0
        %783 = vmatpush1.msra.mxu0 0.0
        %784 = vmatprep.subr.mxu0 0.0
        %785 = vmatpush1.msra.mxu0 0.0
        %786 = vmatprep.subr.mxu0 0.0
        %787 = vmatpush1.msra.mxu0 0.0
        %788 = vmatprep.subr.mxu0 0.0
        %789 = vmatpush1.msra.mxu0 0.0
        %790 = vmatprep.subr.mxu0 0.0
        %791 = vmatpush1.msra.mxu0 0.0
        %792 = vmatprep.subr.mxu0 0.0
        %793 = vmatpush1.msra.mxu0 0.0
        %794 = vmatprep.subr.mxu0 0.0
        %795 = vmatpush1.msra.mxu0 0.0
        %796 = vmatprep.subr.mxu0 0.0
        %797 = vmatpush1.msra.mxu0 0.0
        %798 = vmatprep.subr.mxu0 0.0
        %799 = vmatpush1.msra.mxu0 0.0
        %800 = vmatprep.subr.mxu0 0.0
        %801 = vmatpush1.msra.mxu0 0.0
        %802 = vmatprep.subr.mxu0 0.0
        %803 = vmatpush1.msra.mxu0 0.0
        %804 = vmatprep.subr.mxu0 0.0
        %805 = vmatpush1.msra.mxu0 0.0
        %806 = vmatprep.subr.mxu0 0.0
        %807 = vmatpush1.msra.mxu0 0.0
        %808 = vmatprep.subr.mxu0 0.0
        %809 = vmatpush1.msra.mxu0 0.0
        %810 = vmatprep.subr.mxu0 0.0
        %811 = vmatpush1.msra.mxu0 0.0
        %812 = vmatprep.subr.mxu0 0.0
        %813 = vmatpush1.msra.mxu0 0.0
        %814 = vmatprep.subr.mxu0 0.0
        %815 = vmatpush1.msra.mxu0 0.0
        %816 = vmatprep.subr.mxu0 0.0
        %817 = vmatpush1.msra.mxu0 0.0
        %818 = vmatprep.subr.mxu0 0.0
        %819 = vmatpush1.msra.mxu0 0.0
        %820 = vmatprep.subr.mxu0 0.0
        %821 = vmatpush1.msra.mxu0 0.0
        %822 = vmatprep.subr.mxu0 0.0
        %823 = vmatpush1.msra.mxu0 0.0
        %824 = vmatprep.mubr.f32.mxu0 0.0
        %825 = vmatmul.mubr.f32.gmra.mrb[0].mxu0 %v751
        %v826 = vpop.f32.mrb[0].mxu0
        %v827 = vadd.f32 0.0, %v826
        %v828 = vpop.f32.mrb[0].mxu0
        %v829 = vadd.f32 0.0, %v828
        %830 = vdwg.mxu0
        %831 = vmatprep.subr.mxu0 0.0
        %832 = vmatpush1.msra.mxu0 %v758
        %833 = vmatprep.subr.mxu0 0.0
        %834 = vmatpush1.msra.mxu0 0.0
        %835 = vmatprep.subr.mxu0 0.0
        %836 = vmatpush1.msra.mxu0 0.0
        %837 = vmatprep.subr.mxu0 0.0
        %838 = vmatpush1.msra.mxu0 0.0
        %839 = vmatprep.subr.mxu0 0.0
        %840 = vmatpush1.msra.mxu0 0.0
        %841 = vmatprep.subr.mxu0 0.0
        %842 = vmatpush1.msra.mxu0 0.0
        %843 = vmatprep.subr.mxu0 0.0
        %844 = vmatpush1.msra.mxu0 0.0
        %845 = vmatprep.subr.mxu0 0.0
        %846 = vmatpush1.msra.mxu0 0.0
        %847 = vmatprep.subr.mxu0 0.0
        %848 = vmatpush1.msra.mxu0 0.0
        %849 = vmatprep.subr.mxu0 0.0
        %850 = vmatpush1.msra.mxu0 0.0
        %851 = vmatprep.subr.mxu0 0.0
        %852 = vmatpush1.msra.mxu0 0.0
        %853 = vmatprep.subr.mxu0 0.0
        %854 = vmatpush1.msra.mxu0 0.0
        %855 = vmatprep.subr.mxu0 0.0
        %856 = vmatpush1.msra.mxu0 0.0
        %857 = vmatprep.subr.mxu0 0.0
        %858 = vmatpush1.msra.mxu0 0.0
        %859 = vmatprep.subr.mxu0 0.0
        %860 = vmatpush1.msra.mxu0 0.0
        %861 = vmatprep.subr.mxu0 0.0
        %862 = vmatpush1.msra.mxu0 0.0
        %863 = vmatprep.subr.mxu0 0.0
        %864 = vmatpush1.msra.mxu0 0.0
        %865 = vmatprep.subr.mxu0 0.0
        %866 = vmatpush1.msra.mxu0 0.0
        %867 = vmatprep.subr.mxu0 0.0
        %868 = vmatpush1.msra.mxu0 0.0
        %869 = vmatprep.subr.mxu0 0.0
        %870 = vmatpush1.msra.mxu0 0.0
        %871 = vmatprep.subr.mxu0 0.0
        %872 = vmatpush1.msra.mxu0 0.0
        %873 = vmatprep.subr.mxu0 0.0
        %874 = vmatpush1.msra.mxu0 0.0
        %875 = vmatprep.subr.mxu0 0.0
        %876 = vmatpush1.msra.mxu0 0.0
        %877 = vmatprep.subr.mxu0 0.0
        %878 = vmatpush1.msra.mxu0 0.0
        %879 = vmatprep.subr.mxu0 0.0
        %880 = vmatpush1.msra.mxu0 0.0
        %881 = vmatprep.subr.mxu0 0.0
        %882 = vmatpush1.msra.mxu0 0.0
        %883 = vmatprep.subr.mxu0 0.0
        %884 = vmatpush1.msra.mxu0 0.0
        %885 = vmatprep.subr.mxu0 0.0
        %886 = vmatpush1.msra.mxu0 0.0
        %887 = vmatprep.subr.mxu0 0.0
        %888 = vmatpush1.msra.mxu0 0.0
        %889 = vmatprep.subr.mxu0 0.0
        %890 = vmatpush1.msra.mxu0 0.0
        %891 = vmatprep.subr.mxu0 0.0
        %892 = vmatpush1.msra.mxu0 0.0
        %893 = vmatprep.subr.mxu0 0.0
        %894 = vmatpush1.msra.mxu0 0.0
        %895 = vmatprep.mubr.f32.mxu0 0.0
        %896 = vmatmul.mubr.f32.gmra.mrb[0].mxu0 %v751
        %v897 = vpop.f32.mrb[0].mxu0
        %v898 = vadd.f32 0.0, %v897
        %v899 = vpop.f32.mrb[0].mxu0
        %900 = vdwg.mxu0
        %v902 = vsel %vm749, %v734, 0
        %v904 = vsel %vm753, %v711, 0
        %v906 = vsel %vm753, %v725, 0
        %v908 = vsel %vm753, %v733, 0
        %910 = vmatprep.subr.mxu0 %v906
        %911 = vmatpush1.msra.mxu0 %v904
        %912 = vmatprep.subr.mxu0 0.0
        %913 = vmatpush1.msra.mxu0 0.0
        %914 = vmatprep.subr.mxu0 0.0
        %915 = vmatpush1.msra.mxu0 0.0
        %916 = vmatprep.subr.mxu0 0.0
        %917 = vmatpush1.msra.mxu0 0.0
        %918 = vmatprep.subr.mxu0 0.0
        %919 = vmatpush1.msra.mxu0 0.0
        %920 = vmatprep.subr.mxu0 0.0
        %921 = vmatpush1.msra.mxu0 0.0
        %922 = vmatprep.subr.mxu0 0.0
        %923 = vmatpush1.msra.mxu0 0.0
        %924 = vmatprep.subr.mxu0 0.0
        %925 = vmatpush1.msra.mxu0 0.0
        %926 = vmatprep.subr.mxu0 0.0
        %927 = vmatpush1.msra.mxu0 0.0
        %928 = vmatprep.subr.mxu0 0.0
        %929 = vmatpush1.msra.mxu0 0.0
        %930 = vmatprep.subr.mxu0 0.0
        %931 = vmatpush1.msra.mxu0 0.0
        %932 = vmatprep.subr.mxu0 0.0
        %933 = vmatpush1.msra.mxu0 0.0
        %934 = vmatprep.subr.mxu0 0.0
        %935 = vmatpush1.msra.mxu0 0.0
        %936 = vmatprep.subr.mxu0 0.0
        %937 = vmatpush1.msra.mxu0 0.0
        %938 = vmatprep.subr.mxu0 0.0
        %939 = vmatpush1.msra.mxu0 0.0
        %940 = vmatprep.subr.mxu0 0.0
        %941 = vmatpush1.msra.mxu0 0.0
        %942 = vmatprep.subr.mxu0 0.0
        %943 = vmatpush1.msra.mxu0 0.0
        %944 = vmatprep.subr.mxu0 0.0
        %945 = vmatpush1.msra.mxu0 0.0
        %946 = vmatprep.subr.mxu0 0.0
        %947 = vmatpush1.msra.mxu0 0.0
        %948 = vmatprep.subr.mxu0 0.0
        %949 = vmatpush1.msra.mxu0 0.0
        %950 = vmatprep.subr.mxu0 0.0
        %951 = vmatpush1.msra.mxu0 0.0
        %952 = vmatprep.subr.mxu0 0.0
        %953 = vmatpush1.msra.mxu0 0.0
        %954 = vmatprep.subr.mxu0 0.0
        %955 = vmatpush1.msra.mxu0 0.0
        %956 = vmatprep.subr.mxu0 0.0
        %957 = vmatpush1.msra.mxu0 0.0
        %958 = vmatprep.subr.mxu0 0.0
        %959 = vmatpush1.msra.mxu0 0.0
        %960 = vmatprep.subr.mxu0 0.0
        %961 = vmatpush1.msra.mxu0 0.0
        %962 = vmatprep.subr.mxu0 0.0
        %963 = vmatpush1.msra.mxu0 0.0
        %964 = vmatprep.subr.mxu0 0.0
        %965 = vmatpush1.msra.mxu0 0.0
        %966 = vmatprep.subr.mxu0 0.0
        %967 = vmatpush1.msra.mxu0 0.0
        %968 = vmatprep.subr.mxu0 0.0
        %969 = vmatpush1.msra.mxu0 0.0
        %970 = vmatprep.subr.mxu0 0.0
        %971 = vmatpush1.msra.mxu0 0.0
        %972 = vmatprep.subr.mxu0 0.0
        %973 = vmatpush1.msra.mxu0 0.0
        %974 = vmatprep.mubr.f32.mxu0 0.0
        %975 = vmatmul.mubr.f32.gmra.mrb[0].mxu0 %v902
        %v976 = vpop.f32.mrb[0].mxu0
        %v977 = vadd.f32 %v827, %v976
        %v978 = vpop.f32.mrb[0].mxu0
        %v979 = vadd.f32 %v829, %v978
        %980 = vdwg.mxu0
        %981 = vmatprep.subr.mxu0 0.0
        %982 = vmatpush1.msra.mxu0 %v908
        %983 = vmatprep.subr.mxu0 0.0
        %984 = vmatpush1.msra.mxu0 0.0
        %985 = vmatprep.subr.mxu0 0.0
        %986 = vmatpush1.msra.mxu0 0.0
        %987 = vmatprep.subr.mxu0 0.0
        %988 = vmatpush1.msra.mxu0 0.0
        %989 = vmatprep.subr.mxu0 0.0
        %990 = vmatpush1.msra.mxu0 0.0
        %991 = vmatprep.subr.mxu0 0.0
        %992 = vmatpush1.msra.mxu0 0.0
        %993 = vmatprep.subr.mxu0 0.0
        %994 = vmatpush1.msra.mxu0 0.0
        %995 = vmatprep.subr.mxu0 0.0
        %996 = vmatpush1.msra.mxu0 0.0
        %997 = vmatprep.subr.mxu0 0.0
        %998 = vmatpush1.msra.mxu0 0.0
        %999 = vmatprep.subr.mxu0 0.0
        %1000 = vmatpush1.msra.mxu0 0.0
        %1001 = vmatprep.subr.mxu0 0.0
        %1002 = vmatpush1.msra.mxu0 0.0
        %1003 = vmatprep.subr.mxu0 0.0
        %1004 = vmatpush1.msra.mxu0 0.0
        %1005 = vmatprep.subr.mxu0 0.0
        %1006 = vmatpush1.msra.mxu0 0.0
        %1007 = vmatprep.subr.mxu0 0.0
        %1008 = vmatpush1.msra.mxu0 0.0
        %1009 = vmatprep.subr.mxu0 0.0
        %1010 = vmatpush1.msra.mxu0 0.0
        %1011 = vmatprep.subr.mxu0 0.0
        %1012 = vmatpush1.msra.mxu0 0.0
        %1013 = vmatprep.subr.mxu0 0.0
        %1014 = vmatpush1.msra.mxu0 0.0
        %1015 = vmatprep.subr.mxu0 0.0
        %1016 = vmatpush1.msra.mxu0 0.0
        %1017 = vmatprep.subr.mxu0 0.0
        %1018 = vmatpush1.msra.mxu0 0.0
        %1019 = vmatprep.subr.mxu0 0.0
        %1020 = vmatpush1.msra.mxu0 0.0
        %1021 = vmatprep.subr.mxu0 0.0
        %1022 = vmatpush1.msra.mxu0 0.0
        %1023 = vmatprep.subr.mxu0 0.0
        %1024 = vmatpush1.msra.mxu0 0.0
        %1025 = vmatprep.subr.mxu0 0.0
        %1026 = vmatpush1.msra.mxu0 0.0
        %1027 = vmatprep.subr.mxu0 0.0
        %1028 = vmatpush1.msra.mxu0 0.0
        %1029 = vmatprep.subr.mxu0 0.0
        %1030 = vmatpush1.msra.mxu0 0.0
        %1031 = vmatprep.subr.mxu0 0.0
        %1032 = vmatpush1.msra.mxu0 0.0
        %1033 = vmatprep.subr.mxu0 0.0
        %1034 = vmatpush1.msra.mxu0 0.0
        %1035 = vmatprep.subr.mxu0 0.0
        %1036 = vmatpush1.msra.mxu0 0.0
        %1037 = vmatprep.subr.mxu0 0.0
        %1038 = vmatpush1.msra.mxu0 0.0
        %1039 = vmatprep.subr.mxu0 0.0
        %1040 = vmatpush1.msra.mxu0 0.0
        %1041 = vmatprep.subr.mxu0 0.0
        %1042 = vmatpush1.msra.mxu0 0.0
        %1043 = vmatprep.subr.mxu0 0.0
        %1044 = vmatpush1.msra.mxu0 0.0
        %1045 = vmatprep.mubr.f32.mxu0 0.0
        %1046 = vmatmul.mubr.f32.gmra.mrb[0].mxu0 %v902
        %v1047 = vpop.f32.mrb[0].mxu0
        %v1048 = vadd.f32 %v898, %v1047
        %v1049 = vpop.f32.mrb[0].mxu0
        %1050 = vdwg.mxu0
        %s1051 = scalar_lea.vmem %s1, 16
        %v1052 = vld [vmem:[%s1051] sm:$0xff]
        %1053 = vrot.lane.b32.xlu0 %v711, 126
        %v1054 = vpop.permute.xlu0 %1053
        %1055 = vrot.lane.b32.xlu0 %v725, 126
        %v1056 = vpop.permute.xlu0 %1055
        %1057 = vrot.lane.b32.xlu0 %v733, 126
        %v1058 = vpop.permute.xlu0 %1057
        %v1059 = vsel %vm710, %v1054, %v1056
        %v1060 = vsel %vm710, %v1056, %v1058
        %v1062 = vsel %vm749, %v1052, 0
        %v1064 = vsel %vm753, %v1059, 0
        %v1066 = vsel %vm753, %v1060, 0
        %v1068 = vsel %vm753, %v1058, 0
        %1070 = vmatprep.subr.mxu0 %v1066
        %1071 = vmatpush1.msra.mxu0 %v1064
        %1072 = vmatprep.subr.mxu0 0.0
        %1073 = vmatpush1.msra.mxu0 0.0
        %1074 = vmatprep.subr.mxu0 0.0
        %1075 = vmatpush1.msra.mxu0 0.0
        %1076 = vmatprep.subr.mxu0 0.0
        %1077 = vmatpush1.msra.mxu0 0.0
        %1078 = vmatprep.subr.mxu0 0.0
        %1079 = vmatpush1.msra.mxu0 0.0
        %1080 = vmatprep.subr.mxu0 0.0
        %1081 = vmatpush1.msra.mxu0 0.0
        %1082 = vmatprep.subr.mxu0 0.0
        %1083 = vmatpush1.msra.mxu0 0.0
        %1084 = vmatprep.subr.mxu0 0.0
        %1085 = vmatpush1.msra.mxu0 0.0
        %1086 = vmatprep.subr.mxu0 0.0
        %1087 = vmatpush1.msra.mxu0 0.0
        %1088 = vmatprep.subr.mxu0 0.0
        %1089 = vmatpush1.msra.mxu0 0.0
        %1090 = vmatprep.subr.mxu0 0.0
        %1091 = vmatpush1.msra.mxu0 0.0
        %1092 = vmatprep.subr.mxu0 0.0
        %1093 = vmatpush1.msra.mxu0 0.0
        %1094 = vmatprep.subr.mxu0 0.0
        %1095 = vmatpush1.msra.mxu0 0.0
        %1096 = vmatprep.subr.mxu0 0.0
        %1097 = vmatpush1.msra.mxu0 0.0
        %1098 = vmatprep.subr.mxu0 0.0
        %1099 = vmatpush1.msra.mxu0 0.0
        %1100 = vmatprep.subr.mxu0 0.0
        %1101 = vmatpush1.msra.mxu0 0.0
        %1102 = vmatprep.subr.mxu0 0.0
        %1103 = vmatpush1.msra.mxu0 0.0
        %1104 = vmatprep.subr.mxu0 0.0
        %1105 = vmatpush1.msra.mxu0 0.0
        %1106 = vmatprep.subr.mxu0 0.0
        %1107 = vmatpush1.msra.mxu0 0.0
        %1108 = vmatprep.subr.mxu0 0.0
        %1109 = vmatpush1.msra.mxu0 0.0
        %1110 = vmatprep.subr.mxu0 0.0
        %1111 = vmatpush1.msra.mxu0 0.0
        %1112 = vmatprep.subr.mxu0 0.0
        %1113 = vmatpush1.msra.mxu0 0.0
        %1114 = vmatprep.subr.mxu0 0.0
        %1115 = vmatpush1.msra.mxu0 0.0
        %1116 = vmatprep.subr.mxu0 0.0
        %1117 = vmatpush1.msra.mxu0 0.0
        %1118 = vmatprep.subr.mxu0 0.0
        %1119 = vmatpush1.msra.mxu0 0.0
        %1120 = vmatprep.subr.mxu0 0.0
        %1121 = vmatpush1.msra.mxu0 0.0
        %1122 = vmatprep.subr.mxu0 0.0
        %1123 = vmatpush1.msra.mxu0 0.0
        %1124 = vmatprep.subr.mxu0 0.0
        %1125 = vmatpush1.msra.mxu0 0.0
        %1126 = vmatprep.subr.mxu0 0.0
        %1127 = vmatpush1.msra.mxu0 0.0
        %1128 = vmatprep.subr.mxu0 0.0
        %1129 = vmatpush1.msra.mxu0 0.0
        %1130 = vmatprep.subr.mxu0 0.0
        %1131 = vmatpush1.msra.mxu0 0.0
        %1132 = vmatprep.subr.mxu0 0.0
        %1133 = vmatpush1.msra.mxu0 0.0
        %1134 = vmatprep.mubr.f32.mxu0 0.0
        %1135 = vmatmul.mubr.f32.gmra.mrb[0].mxu0 %v1062
        %v1136 = vpop.f32.mrb[0].mxu0
        %v1137 = vadd.f32 0.0, %v1136
        %v1138 = vpop.f32.mrb[0].mxu0
        %v1139 = vadd.f32 0.0, %v1138
        %1140 = vdwg.mxu0
        %1141 = vmatprep.subr.mxu0 0.0
        %1142 = vmatpush1.msra.mxu0 %v1068
        %1143 = vmatprep.subr.mxu0 0.0
        %1144 = vmatpush1.msra.mxu0 0.0
        %1145 = vmatprep.subr.mxu0 0.0
        %1146 = vmatpush1.msra.mxu0 0.0
        %1147 = vmatprep.subr.mxu0 0.0
        %1148 = vmatpush1.msra.mxu0 0.0
        %1149 = vmatprep.subr.mxu0 0.0
        %1150 = vmatpush1.msra.mxu0 0.0
        %1151 = vmatprep.subr.mxu0 0.0
        %1152 = vmatpush1.msra.mxu0 0.0
        %1153 = vmatprep.subr.mxu0 0.0
        %1154 = vmatpush1.msra.mxu0 0.0
        %1155 = vmatprep.subr.mxu0 0.0
        %1156 = vmatpush1.msra.mxu0 0.0
        %1157 = vmatprep.subr.mxu0 0.0
        %1158 = vmatpush1.msra.mxu0 0.0
        %1159 = vmatprep.subr.mxu0 0.0
        %1160 = vmatpush1.msra.mxu0 0.0
        %1161 = vmatprep.subr.mxu0 0.0
        %1162 = vmatpush1.msra.mxu0 0.0
        %1163 = vmatprep.subr.mxu0 0.0
        %1164 = vmatpush1.msra.mxu0 0.0
        %1165 = vmatprep.subr.mxu0 0.0
        %1166 = vmatpush1.msra.mxu0 0.0
        %1167 = vmatprep.subr.mxu0 0.0
        %1168 = vmatpush1.msra.mxu0 0.0
        %1169 = vmatprep.subr.mxu0 0.0
        %1170 = vmatpush1.msra.mxu0 0.0
        %1171 = vmatprep.subr.mxu0 0.0
        %1172 = vmatpush1.msra.mxu0 0.0
        %1173 = vmatprep.subr.mxu0 0.0
        %1174 = vmatpush1.msra.mxu0 0.0
        %1175 = vmatprep.subr.mxu0 0.0
        %1176 = vmatpush1.msra.mxu0 0.0
        %1177 = vmatprep.subr.mxu0 0.0
        %1178 = vmatpush1.msra.mxu0 0.0
        %1179 = vmatprep.subr.mxu0 0.0
        %1180 = vmatpush1.msra.mxu0 0.0
        %1181 = vmatprep.subr.mxu0 0.0
        %1182 = vmatpush1.msra.mxu0 0.0
        %1183 = vmatprep.subr.mxu0 0.0
        %1184 = vmatpush1.msra.mxu0 0.0
        %1185 = vmatprep.subr.mxu0 0.0
        %1186 = vmatpush1.msra.mxu0 0.0
        %1187 = vmatprep.subr.mxu0 0.0
        %1188 = vmatpush1.msra.mxu0 0.0
        %1189 = vmatprep.subr.mxu0 0.0
        %1190 = vmatpush1.msra.mxu0 0.0
        %1191 = vmatprep.subr.mxu0 0.0
        %1192 = vmatpush1.msra.mxu0 0.0
        %1193 = vmatprep.subr.mxu0 0.0
        %1194 = vmatpush1.msra.mxu0 0.0
        %1195 = vmatprep.subr.mxu0 0.0
        %1196 = vmatpush1.msra.mxu0 0.0
        %1197 = vmatprep.subr.mxu0 0.0
        %1198 = vmatpush1.msra.mxu0 0.0
        %1199 = vmatprep.subr.mxu0 0.0
        %1200 = vmatpush1.msra.mxu0 0.0
        %1201 = vmatprep.subr.mxu0 0.0
        %1202 = vmatpush1.msra.mxu0 0.0
        %1203 = vmatprep.subr.mxu0 0.0
        %1204 = vmatpush1.msra.mxu0 0.0
        %1205 = vmatprep.mubr.f32.mxu0 0.0
        %1206 = vmatmul.mubr.f32.gmra.mrb[0].mxu0 %v1062
        %v1207 = vpop.f32.mrb[0].mxu0
        %v1208 = vadd.f32 0.0, %v1207
        %v1209 = vpop.f32.mrb[0].mxu0
        %1210 = vdwg.mxu0
        %v1211 = vadd.f32 %v977, %v1137
        %v1212 = vadd.f32 %v979, %v1139
        %v1213 = vadd.f32 %v1048, %v1208
        %s1214 = scalar_lea.vmem %s1, 24
        %v1215 = vld [vmem:[%s1214] sm:$0xff]
        %1216 = vrot.lane.b32.xlu0 %v711, 110
        %v1217 = vpop.permute.xlu0 %1216
        %1218 = vrot.lane.b32.xlu0 %v725, 110
        %v1219 = vpop.permute.xlu0 %1218
        %1220 = vrot.lane.b32.xlu0 %v733, 110
        %v1221 = vpop.permute.xlu0 %1220
        %vm1222 = vcmask 900096
        %v1223 = vsel %vm1222, %v1217, %v1219
        %v1224 = vsel %vm1222, %v1219, %v1221
        %v1226 = vsel %vm749, %v1215, 0
        %v1228 = vsel %vm753, %v1223, 0
        %v1230 = vsel %vm753, %v1224, 0
        %v1232 = vsel %vm753, %v1221, 0
        %1234 = vmatprep.subr.mxu0 %v1230
        %1235 = vmatpush1.msra.mxu0 %v1228
        %1236 = vmatprep.subr.mxu0 0.0
        %1237 = vmatpush1.msra.mxu0 0.0
        %1238 = vmatprep.subr.mxu0 0.0
        %1239 = vmatpush1.msra.mxu0 0.0
        %1240 = vmatprep.subr.mxu0 0.0
        %1241 = vmatpush1.msra.mxu0 0.0
        %1242 = vmatprep.subr.mxu0 0.0
        %1243 = vmatpush1.msra.mxu0 0.0
        %1244 = vmatprep.subr.mxu0 0.0
        %1245 = vmatpush1.msra.mxu0 0.0
        %1246 = vmatprep.subr.mxu0 0.0
        %1247 = vmatpush1.msra.mxu0 0.0
        %1248 = vmatprep.subr.mxu0 0.0
        %1249 = vmatpush1.msra.mxu0 0.0
        %1250 = vmatprep.subr.mxu0 0.0
        %1251 = vmatpush1.msra.mxu0 0.0
        %1252 = vmatprep.subr.mxu0 0.0
        %1253 = vmatpush1.msra.mxu0 0.0
        %1254 = vmatprep.subr.mxu0 0.0
        %1255 = vmatpush1.msra.mxu0 0.0
        %1256 = vmatprep.subr.mxu0 0.0
        %1257 = vmatpush1.msra.mxu0 0.0
        %1258 = vmatprep.subr.mxu0 0.0
        %1259 = vmatpush1.msra.mxu0 0.0
        %1260 = vmatprep.subr.mxu0 0.0
        %1261 = vmatpush1.msra.mxu0 0.0
        %1262 = vmatprep.subr.mxu0 0.0
        %1263 = vmatpush1.msra.mxu0 0.0
        %1264 = vmatprep.subr.mxu0 0.0
        %1265 = vmatpush1.msra.mxu0 0.0
        %1266 = vmatprep.subr.mxu0 0.0
        %1267 = vmatpush1.msra.mxu0 0.0
        %1268 = vmatprep.subr.mxu0 0.0
        %1269 = vmatpush1.msra.mxu0 0.0
        %1270 = vmatprep.subr.mxu0 0.0
        %1271 = vmatpush1.msra.mxu0 0.0
        %1272 = vmatprep.subr.mxu0 0.0
        %1273 = vmatpush1.msra.mxu0 0.0
        %1274 = vmatprep.subr.mxu0 0.0
        %1275 = vmatpush1.msra.mxu0 0.0
        %1276 = vmatprep.subr.mxu0 0.0
        %1277 = vmatpush1.msra.mxu0 0.0
        %1278 = vmatprep.subr.mxu0 0.0
        %1279 = vmatpush1.msra.mxu0 0.0
        %1280 = vmatprep.subr.mxu0 0.0
        %1281 = vmatpush1.msra.mxu0 0.0
        %1282 = vmatprep.subr.mxu0 0.0
        %1283 = vmatpush1.msra.mxu0 0.0
        %1284 = vmatprep.subr.mxu0 0.0
        %1285 = vmatpush1.msra.mxu0 0.0
        %1286 = vmatprep.subr.mxu0 0.0
        %1287 = vmatpush1.msra.mxu0 0.0
        %1288 = vmatprep.subr.mxu0 0.0
        %1289 = vmatpush1.msra.mxu0 0.0
        %1290 = vmatprep.subr.mxu0 0.0
        %1291 = vmatpush1.msra.mxu0 0.0
        %1292 = vmatprep.subr.mxu0 0.0
        %1293 = vmatpush1.msra.mxu0 0.0
        %1294 = vmatprep.subr.mxu0 0.0
        %1295 = vmatpush1.msra.mxu0 0.0
        %1296 = vmatprep.subr.mxu0 0.0
        %1297 = vmatpush1.msra.mxu0 0.0
        %1298 = vmatprep.mubr.f32.mxu0 0.0
        %1299 = vmatmul.mubr.f32.gmra.mrb[0].mxu0 %v1226
        %v1300 = vpop.f32.mrb[0].mxu0
        %v1301 = vadd.f32 0.0, %v1300
        %v1302 = vpop.f32.mrb[0].mxu0
        %v1303 = vadd.f32 0.0, %v1302
        %1304 = vdwg.mxu0
        %1305 = vmatprep.subr.mxu0 0.0
        %1306 = vmatpush1.msra.mxu0 %v1232
        %1307 = vmatprep.subr.mxu0 0.0
        %1308 = vmatpush1.msra.mxu0 0.0
        %1309 = vmatprep.subr.mxu0 0.0
        %1310 = vmatpush1.msra.mxu0 0.0
        %1311 = vmatprep.subr.mxu0 0.0
        %1312 = vmatpush1.msra.mxu0 0.0
        %1313 = vmatprep.subr.mxu0 0.0
        %1314 = vmatpush1.msra.mxu0 0.0
        %1315 = vmatprep.subr.mxu0 0.0
        %1316 = vmatpush1.msra.mxu0 0.0
        %1317 = vmatprep.subr.mxu0 0.0
        %1318 = vmatpush1.msra.mxu0 0.0
        %1319 = vmatprep.subr.mxu0 0.0
        %1320 = vmatpush1.msra.mxu0 0.0
        %1321 = vmatprep.subr.mxu0 0.0
        %1322 = vmatpush1.msra.mxu0 0.0
        %1323 = vmatprep.subr.mxu0 0.0
        %1324 = vmatpush1.msra.mxu0 0.0
        %1325 = vmatprep.subr.mxu0 0.0
        %1326 = vmatpush1.msra.mxu0 0.0
        %1327 = vmatprep.subr.mxu0 0.0
        %1328 = vmatpush1.msra.mxu0 0.0
        %1329 = vmatprep.subr.mxu0 0.0
        %1330 = vmatpush1.msra.mxu0 0.0
        %1331 = vmatprep.subr.mxu0 0.0
        %1332 = vmatpush1.msra.mxu0 0.0
        %1333 = vmatprep.subr.mxu0 0.0
        %1334 = vmatpush1.msra.mxu0 0.0
        %1335 = vmatprep.subr.mxu0 0.0
        %1336 = vmatpush1.msra.mxu0 0.0
        %1337 = vmatprep.subr.mxu0 0.0
        %1338 = vmatpush1.msra.mxu0 0.0
        %1339 = vmatprep.subr.mxu0 0.0
        %1340 = vmatpush1.msra.mxu0 0.0
        %1341 = vmatprep.subr.mxu0 0.0
        %1342 = vmatpush1.msra.mxu0 0.0
        %1343 = vmatprep.subr.mxu0 0.0
        %1344 = vmatpush1.msra.mxu0 0.0
        %1345 = vmatprep.subr.mxu0 0.0
        %1346 = vmatpush1.msra.mxu0 0.0
        %1347 = vmatprep.subr.mxu0 0.0
        %1348 = vmatpush1.msra.mxu0 0.0
        %1349 = vmatprep.subr.mxu0 0.0
        %1350 = vmatpush1.msra.mxu0 0.0
        %1351 = vmatprep.subr.mxu0 0.0
        %1352 = vmatpush1.msra.mxu0 0.0
        %1353 = vmatprep.subr.mxu0 0.0
        %1354 = vmatpush1.msra.mxu0 0.0
        %1355 = vmatprep.subr.mxu0 0.0
        %1356 = vmatpush1.msra.mxu0 0.0
        %1357 = vmatprep.subr.mxu0 0.0
        %1358 = vmatpush1.msra.mxu0 0.0
        %1359 = vmatprep.subr.mxu0 0.0
        %1360 = vmatpush1.msra.mxu0 0.0
        %1361 = vmatprep.subr.mxu0 0.0
        %1362 = vmatpush1.msra.mxu0 0.0
        %1363 = vmatprep.subr.mxu0 0.0
        %1364 = vmatpush1.msra.mxu0 0.0
        %1365 = vmatprep.subr.mxu0 0.0
        %1366 = vmatpush1.msra.mxu0 0.0
        %1367 = vmatprep.subr.mxu0 0.0
        %1368 = vmatpush1.msra.mxu0 0.0
        %1369 = vmatprep.mubr.f32.mxu0 0.0
        %1370 = vmatmul.mubr.f32.gmra.mrb[0].mxu0 %v1226
        %v1371 = vpop.f32.mrb[0].mxu0
        %v1372 = vadd.f32 0.0, %v1371
        %v1373 = vpop.f32.mrb[0].mxu0
        %1374 = vdwg.mxu0
        %v1375 = vadd.f32 %v1211, %v1301
        %v1376 = vadd.f32 %v1212, %v1303
        %v1377 = vadd.f32 %v1213, %v1372
        %s1378 = scalar_lea.vmem %s1, 32
        %v1379 = vld [vmem:[%s1378] sm:$0xff]
        %1380 = vrot.lane.b32.xlu0 %v711, 109
        %v1381 = vpop.permute.xlu0 %1380
        %1382 = vrot.lane.b32.xlu0 %v725, 109
        %v1383 = vpop.permute.xlu0 %1382
        %1384 = vrot.lane.b32.xlu0 %v733, 109
        %v1385 = vpop.permute.xlu0 %1384
        %vm1386 = vcmask 891904
        %v1387 = vsel %vm1386, %v1381, %v1383
        %v1388 = vsel %vm1386, %v1383, %v1385
        %v1390 = vsel %vm749, %v1379, 0
        %v1392 = vsel %vm753, %v1387, 0
        %v1394 = vsel %vm753, %v1388, 0
        %v1396 = vsel %vm753, %v1385, 0
        %1398 = vmatprep.subr.mxu0 %v1394
        %1399 = vmatpush1.msra.mxu0 %v1392
        %1400 = vmatprep.subr.mxu0 0.0
        %1401 = vmatpush1.msra.mxu0 0.0
        %1402 = vmatprep.subr.mxu0 0.0
        %1403 = vmatpush1.msra.mxu0 0.0
        %1404 = vmatprep.subr.mxu0 0.0
        %1405 = vmatpush1.msra.mxu0 0.0
        %1406 = vmatprep.subr.mxu0 0.0
        %1407 = vmatpush1.msra.mxu0 0.0
        %1408 = vmatprep.subr.mxu0 0.0
        %1409 = vmatpush1.msra.mxu0 0.0
        %1410 = vmatprep.subr.mxu0 0.0
        %1411 = vmatpush1.msra.mxu0 0.0
        %1412 = vmatprep.subr.mxu0 0.0
        %1413 = vmatpush1.msra.mxu0 0.0
        %1414 = vmatprep.subr.mxu0 0.0
        %1415 = vmatpush1.msra.mxu0 0.0
        %1416 = vmatprep.subr.mxu0 0.0
        %1417 = vmatpush1.msra.mxu0 0.0
        %1418 = vmatprep.subr.mxu0 0.0
        %1419 = vmatpush1.msra.mxu0 0.0
        %1420 = vmatprep.subr.mxu0 0.0
        %1421 = vmatpush1.msra.mxu0 0.0
        %1422 = vmatprep.subr.mxu0 0.0
        %1423 = vmatpush1.msra.mxu0 0.0
        %1424 = vmatprep.subr.mxu0 0.0
        %1425 = vmatpush1.msra.mxu0 0.0
        %1426 = vmatprep.subr.mxu0 0.0
        %1427 = vmatpush1.msra.mxu0 0.0
        %1428 = vmatprep.subr.mxu0 0.0
        %1429 = vmatpush1.msra.mxu0 0.0
        %1430 = vmatprep.subr.mxu0 0.0
        %1431 = vmatpush1.msra.mxu0 0.0
        %1432 = vmatprep.subr.mxu0 0.0
        %1433 = vmatpush1.msra.mxu0 0.0
        %1434 = vmatprep.subr.mxu0 0.0
        %1435 = vmatpush1.msra.mxu0 0.0
        %1436 = vmatprep.subr.mxu0 0.0
        %1437 = vmatpush1.msra.mxu0 0.0
        %1438 = vmatprep.subr.mxu0 0.0
        %1439 = vmatpush1.msra.mxu0 0.0
        %1440 = vmatprep.subr.mxu0 0.0
        %1441 = vmatpush1.msra.mxu0 0.0
        %1442 = vmatprep.subr.mxu0 0.0
        %1443 = vmatpush1.msra.mxu0 0.0
        %1444 = vmatprep.subr.mxu0 0.0
        %1445 = vmatpush1.msra.mxu0 0.0
        %1446 = vmatprep.subr.mxu0 0.0
        %1447 = vmatpush1.msra.mxu0 0.0
        %1448 = vmatprep.subr.mxu0 0.0
        %1449 = vmatpush1.msra.mxu0 0.0
        %1450 = vmatprep.subr.mxu0 0.0
        %1451 = vmatpush1.msra.mxu0 0.0
        %1452 = vmatprep.subr.mxu0 0.0
        %1453 = vmatpush1.msra.mxu0 0.0
        %1454 = vmatprep.subr.mxu0 0.0
        %1455 = vmatpush1.msra.mxu0 0.0
        %1456 = vmatprep.subr.mxu0 0.0
        %1457 = vmatpush1.msra.mxu0 0.0
        %1458 = vmatprep.subr.mxu0 0.0
        %1459 = vmatpush1.msra.mxu0 0.0
        %1460 = vmatprep.subr.mxu0 0.0
        %1461 = vmatpush1.msra.mxu0 0.0
        %1462 = vmatprep.mubr.f32.mxu0 0.0
        %1463 = vmatmul.mubr.f32.gmra.mrb[0].mxu0 %v1390
        %v1464 = vpop.f32.mrb[0].mxu0
        %v1465 = vadd.f32 0.0, %v1464
        %v1466 = vpop.f32.mrb[0].mxu0
        %v1467 = vadd.f32 0.0, %v1466
        %1468 = vdwg.mxu0
        %1469 = vmatprep.subr.mxu0 0.0
        %1470 = vmatpush1.msra.mxu0 %v1396
        %1471 = vmatprep.subr.mxu0 0.0
        %1472 = vmatpush1.msra.mxu0 0.0
        %1473 = vmatprep.subr.mxu0 0.0
        %1474 = vmatpush1.msra.mxu0 0.0
        %1475 = vmatprep.subr.mxu0 0.0
        %1476 = vmatpush1.msra.mxu0 0.0
        %1477 = vmatprep.subr.mxu0 0.0
        %1478 = vmatpush1.msra.mxu0 0.0
        %1479 = vmatprep.subr.mxu0 0.0
        %1480 = vmatpush1.msra.mxu0 0.0
        %1481 = vmatprep.subr.mxu0 0.0
        %1482 = vmatpush1.msra.mxu0 0.0
        %1483 = vmatprep.subr.mxu0 0.0
        %1484 = vmatpush1.msra.mxu0 0.0
        %1485 = vmatprep.subr.mxu0 0.0
        %1486 = vmatpush1.msra.mxu0 0.0
        %1487 = vmatprep.subr.mxu0 0.0
        %1488 = vmatpush1.msra.mxu0 0.0
        %1489 = vmatprep.subr.mxu0 0.0
        %1490 = vmatpush1.msra.mxu0 0.0
        %1491 = vmatprep.subr.mxu0 0.0
        %1492 = vmatpush1.msra.mxu0 0.0
        %1493 = vmatprep.subr.mxu0 0.0
        %1494 = vmatpush1.msra.mxu0 0.0
        %1495 = vmatprep.subr.mxu0 0.0
        %1496 = vmatpush1.msra.mxu0 0.0
        %1497 = vmatprep.subr.mxu0 0.0
        %1498 = vmatpush1.msra.mxu0 0.0
        %1499 = vmatprep.subr.mxu0 0.0
        %1500 = vmatpush1.msra.mxu0 0.0
        %1501 = vmatprep.subr.mxu0 0.0
        %1502 = vmatpush1.msra.mxu0 0.0
        %1503 = vmatprep.subr.mxu0 0.0
        %1504 = vmatpush1.msra.mxu0 0.0
        %1505 = vmatprep.subr.mxu0 0.0
        %1506 = vmatpush1.msra.mxu0 0.0
        %1507 = vmatprep.subr.mxu0 0.0
        %1508 = vmatpush1.msra.mxu0 0.0
        %1509 = vmatprep.subr.mxu0 0.0
        %1510 = vmatpush1.msra.mxu0 0.0
        %1511 = vmatprep.subr.mxu0 0.0
        %1512 = vmatpush1.msra.mxu0 0.0
        %1513 = vmatprep.subr.mxu0 0.0
        %1514 = vmatpush1.msra.mxu0 0.0
        %1515 = vmatprep.subr.mxu0 0.0
        %1516 = vmatpush1.msra.mxu0 0.0
        %1517 = vmatprep.subr.mxu0 0.0
        %1518 = vmatpush1.msra.mxu0 0.0
        %1519 = vmatprep.subr.mxu0 0.0
        %1520 = vmatpush1.msra.mxu0 0.0
        %1521 = vmatprep.subr.mxu0 0.0
        %1522 = vmatpush1.msra.mxu0 0.0
        %1523 = vmatprep.subr.mxu0 0.0
        %1524 = vmatpush1.msra.mxu0 0.0
        %1525 = vmatprep.subr.mxu0 0.0
        %1526 = vmatpush1.msra.mxu0 0.0
        %1527 = vmatprep.subr.mxu0 0.0
        %1528 = vmatpush1.msra.mxu0 0.0
        %1529 = vmatprep.subr.mxu0 0.0
        %1530 = vmatpush1.msra.mxu0 0.0
        %1531 = vmatprep.subr.mxu0 0.0
        %1532 = vmatpush1.msra.mxu0 0.0
        %1533 = vmatprep.mubr.f32.mxu0 0.0
        %1534 = vmatmul.mubr.f32.gmra.mrb[0].mxu0 %v1390
        %v1535 = vpop.f32.mrb[0].mxu0
        %v1536 = vadd.f32 0.0, %v1535
        %v1537 = vpop.f32.mrb[0].mxu0
        %1538 = vdwg.mxu0
        %v1539 = vadd.f32 %v1375, %v1465
        %v1540 = vadd.f32 %v1376, %v1467
        %v1541 = vadd.f32 %v1377, %v1536
        %s1542 = scalar_lea.vmem %s1, 40
        %v1543 = vld [vmem:[%s1542] sm:$0xff]
        %1544 = vrot.lane.b32.xlu0 %v711, 108
        %v1545 = vpop.permute.xlu0 %1544
        %1546 = vrot.lane.b32.xlu0 %v725, 108
        %v1547 = vpop.permute.xlu0 %1546
        %1548 = vrot.lane.b32.xlu0 %v733, 108
        %v1549 = vpop.permute.xlu0 %1548
        %v1550 = vsel %vm708, %v1545, %v1547
        %v1551 = vsel %vm708, %v1547, %v1549
        %v1553 = vsel %vm749, %v1543, 0
        %v1555 = vsel %vm753, %v1550, 0
        %v1557 = vsel %vm753, %v1551, 0
        %v1559 = vsel %vm753, %v1549, 0
        %1561 = vmatprep.subr.mxu0 %v1557
        %1562 = vmatpush1.msra.mxu0 %v1555
        %1563 = vmatprep.subr.mxu0 0.0
        %1564 = vmatpush1.msra.mxu0 0.0
        %1565 = vmatprep.subr.mxu0 0.0
        %1566 = vmatpush1.msra.mxu0 0.0
        %1567 = vmatprep.subr.mxu0 0.0
        %1568 = vmatpush1.msra.mxu0 0.0
        %1569 = vmatprep.subr.mxu0 0.0
        %1570 = vmatpush1.msra.mxu0 0.0
        %1571 = vmatprep.subr.mxu0 0.0
        %1572 = vmatpush1.msra.mxu0 0.0
        %1573 = vmatprep.subr.mxu0 0.0
        %1574 = vmatpush1.msra.mxu0 0.0
        %1575 = vmatprep.subr.mxu0 0.0
        %1576 = vmatpush1.msra.mxu0 0.0
        %1577 = vmatprep.subr.mxu0 0.0
        %1578 = vmatpush1.msra.mxu0 0.0
        %1579 = vmatprep.subr.mxu0 0.0
        %1580 = vmatpush1.msra.mxu0 0.0
        %1581 = vmatprep.subr.mxu0 0.0
        %1582 = vmatpush1.msra.mxu0 0.0
        %1583 = vmatprep.subr.mxu0 0.0
        %1584 = vmatpush1.msra.mxu0 0.0
        %1585 = vmatprep.subr.mxu0 0.0
        %1586 = vmatpush1.msra.mxu0 0.0
        %1587 = vmatprep.subr.mxu0 0.0
        %1588 = vmatpush1.msra.mxu0 0.0
        %1589 = vmatprep.subr.mxu0 0.0
        %1590 = vmatpush1.msra.mxu0 0.0
        %1591 = vmatprep.subr.mxu0 0.0
        %1592 = vmatpush1.msra.mxu0 0.0
        %1593 = vmatprep.subr.mxu0 0.0
        %1594 = vmatpush1.msra.mxu0 0.0
        %1595 = vmatprep.subr.mxu0 0.0
        %1596 = vmatpush1.msra.mxu0 0.0
        %1597 = vmatprep.subr.mxu0 0.0
        %1598 = vmatpush1.msra.mxu0 0.0
        %1599 = vmatprep.subr.mxu0 0.0
        %1600 = vmatpush1.msra.mxu0 0.0
        %1601 = vmatprep.subr.mxu0 0.0
        %1602 = vmatpush1.msra.mxu0 0.0
        %1603 = vmatprep.subr.mxu0 0.0
        %1604 = vmatpush1.msra.mxu0 0.0
        %1605 = vmatprep.subr.mxu0 0.0
        %1606 = vmatpush1.msra.mxu0 0.0
        %1607 = vmatprep.subr.mxu0 0.0
        %1608 = vmatpush1.msra.mxu0 0.0
        %1609 = vmatprep.subr.mxu0 0.0
        %1610 = vmatpush1.msra.mxu0 0.0
        %1611 = vmatprep.subr.mxu0 0.0
        %1612 = vmatpush1.msra.mxu0 0.0
        %1613 = vmatprep.subr.mxu0 0.0
        %1614 = vmatpush1.msra.mxu0 0.0
        %1615 = vmatprep.subr.mxu0 0.0
        %1616 = vmatpush1.msra.mxu0 0.0
        %1617 = vmatprep.subr.mxu0 0.0
        %1618 = vmatpush1.msra.mxu0 0.0
        %1619 = vmatprep.subr.mxu0 0.0
        %1620 = vmatpush1.msra.mxu0 0.0
        %1621 = vmatprep.subr.mxu0 0.0
        %1622 = vmatpush1.msra.mxu0 0.0
        %1623 = vmatprep.subr.mxu0 0.0
        %1624 = vmatpush1.msra.mxu0 0.0
        %1625 = vmatprep.mubr.f32.mxu0 0.0
        %1626 = vmatmul.mubr.f32.gmra.mrb[0].mxu0 %v1553
        %v1627 = vpop.f32.mrb[0].mxu0
        %v1628 = vadd.f32 0.0, %v1627
        %v1629 = vpop.f32.mrb[0].mxu0
        %v1630 = vadd.f32 0.0, %v1629
        %1631 = vdwg.mxu0
        %1632 = vmatprep.subr.mxu0 0.0
        %1633 = vmatpush1.msra.mxu0 %v1559
        %1634 = vmatprep.subr.mxu0 0.0
        %1635 = vmatpush1.msra.mxu0 0.0
        %1636 = vmatprep.subr.mxu0 0.0
        %1637 = vmatpush1.msra.mxu0 0.0
        %1638 = vmatprep.subr.mxu0 0.0
        %1639 = vmatpush1.msra.mxu0 0.0
        %1640 = vmatprep.subr.mxu0 0.0
        %1641 = vmatpush1.msra.mxu0 0.0
        %1642 = vmatprep.subr.mxu0 0.0
        %1643 = vmatpush1.msra.mxu0 0.0
        %1644 = vmatprep.subr.mxu0 0.0
        %1645 = vmatpush1.msra.mxu0 0.0
        %1646 = vmatprep.subr.mxu0 0.0
        %1647 = vmatpush1.msra.mxu0 0.0
        %1648 = vmatprep.subr.mxu0 0.0
        %1649 = vmatpush1.msra.mxu0 0.0
        %1650 = vmatprep.subr.mxu0 0.0
        %1651 = vmatpush1.msra.mxu0 0.0
        %1652 = vmatprep.subr.mxu0 0.0
        %1653 = vmatpush1.msra.mxu0 0.0
        %1654 = vmatprep.subr.mxu0 0.0
        %1655 = vmatpush1.msra.mxu0 0.0
        %1656 = vmatprep.subr.mxu0 0.0
        %1657 = vmatpush1.msra.mxu0 0.0
        %1658 = vmatprep.subr.mxu0 0.0
        %1659 = vmatpush1.msra.mxu0 0.0
        %1660 = vmatprep.subr.mxu0 0.0
        %1661 = vmatpush1.msra.mxu0 0.0
        %1662 = vmatprep.subr.mxu0 0.0
        %1663 = vmatpush1.msra.mxu0 0.0
        %1664 = vmatprep.subr.mxu0 0.0
        %1665 = vmatpush1.msra.mxu0 0.0
        %1666 = vmatprep.subr.mxu0 0.0
        %1667 = vmatpush1.msra.mxu0 0.0
        %1668 = vmatprep.subr.mxu0 0.0
        %1669 = vmatpush1.msra.mxu0 0.0
        %1670 = vmatprep.subr.mxu0 0.0
        %1671 = vmatpush1.msra.mxu0 0.0
        %1672 = vmatprep.subr.mxu0 0.0
        %1673 = vmatpush1.msra.mxu0 0.0
        %1674 = vmatprep.subr.mxu0 0.0
        %1675 = vmatpush1.msra.mxu0 0.0
        %1676 = vmatprep.subr.mxu0 0.0
        %1677 = vmatpush1.msra.mxu0 0.0
        %1678 = vmatprep.subr.mxu0 0.0
        %1679 = vmatpush1.msra.mxu0 0.0
        %1680 = vmatprep.subr.mxu0 0.0
        %1681 = vmatpush1.msra.mxu0 0.0
        %1682 = vmatprep.subr.mxu0 0.0
        %1683 = vmatpush1.msra.mxu0 0.0
        %1684 = vmatprep.subr.mxu0 0.0
        %1685 = vmatpush1.msra.mxu0 0.0
        %1686 = vmatprep.subr.mxu0 0.0
        %1687 = vmatpush1.msra.mxu0 0.0
        %1688 = vmatprep.subr.mxu0 0.0
        %1689 = vmatpush1.msra.mxu0 0.0
        %1690 = vmatprep.subr.mxu0 0.0
        %1691 = vmatpush1.msra.mxu0 0.0
        %1692 = vmatprep.subr.mxu0 0.0
        %1693 = vmatpush1.msra.mxu0 0.0
        %1694 = vmatprep.subr.mxu0 0.0
        %1695 = vmatpush1.msra.mxu0 0.0
        %1696 = vmatprep.mubr.f32.mxu0 0.0
        %1697 = vmatmul.mubr.f32.gmra.mrb[0].mxu0 %v1553
        %v1698 = vpop.f32.mrb[0].mxu0
        %v1699 = vadd.f32 0.0, %v1698
        %v1700 = vpop.f32.mrb[0].mxu0
        %1701 = vdwg.mxu0
        %v1702 = vadd.f32 %v1539, %v1628
        %v1703 = vadd.f32 %v1540, %v1630
        %v1704 = vadd.f32 %v1541, %v1699
        %s1705 = scalar_lea.vmem %s1, 48
        %v1706 = vld [vmem:[%s1705] sm:$0xff]
        %1707 = vrot.lane.b32.xlu0 %v711, 92
        %v1708 = vpop.permute.xlu0 %1707
        %1709 = vrot.lane.b32.xlu0 %v725, 92
        %v1710 = vpop.permute.xlu0 %1709
        %1711 = vrot.lane.b32.xlu0 %v733, 92
        %v1712 = vpop.permute.xlu0 %1711
        %vm1713 = vcmask 752640
        %v1714 = vsel %vm1713, %v1708, %v1710
        %v1715 = vsel %vm1713, %v1710, %v1712
        %v1717 = vsel %vm749, %v1706, 0
        %v1719 = vsel %vm753, %v1714, 0
        %v1721 = vsel %vm753, %v1715, 0
        %v1723 = vsel %vm753, %v1712, 0
        %1725 = vmatprep.subr.mxu0 %v1721
        %1726 = vmatpush1.msra.mxu0 %v1719
        %1727 = vmatprep.subr.mxu0 0.0
        %1728 = vmatpush1.msra.mxu0 0.0
        %1729 = vmatprep.subr.mxu0 0.0
        %1730 = vmatpush1.msra.mxu0 0.0
        %1731 = vmatprep.subr.mxu0 0.0
        %1732 = vmatpush1.msra.mxu0 0.0
        %1733 = vmatprep.subr.mxu0 0.0
        %1734 = vmatpush1.msra.mxu0 0.0
        %1735 = vmatprep.subr.mxu0 0.0
        %1736 = vmatpush1.msra.mxu0 0.0
        %1737 = vmatprep.subr.mxu0 0.0
        %1738 = vmatpush1.msra.mxu0 0.0
        %1739 = vmatprep.subr.mxu0 0.0
        %1740 = vmatpush1.msra.mxu0 0.0
        %1741 = vmatprep.subr.mxu0 0.0
        %1742 = vmatpush1.msra.mxu0 0.0
        %1743 = vmatprep.subr.mxu0 0.0
        %1744 = vmatpush1.msra.mxu0 0.0
        %1745 = vmatprep.subr.mxu0 0.0
        %1746 = vmatpush1.msra.mxu0 0.0
        %1747 = vmatprep.subr.mxu0 0.0
        %1748 = vmatpush1.msra.mxu0 0.0
        %1749 = vmatprep.subr.mxu0 0.0
        %1750 = vmatpush1.msra.mxu0 0.0
        %1751 = vmatprep.subr.mxu0 0.0
        %1752 = vmatpush1.msra.mxu0 0.0
        %1753 = vmatprep.subr.mxu0 0.0
        %1754 = vmatpush1.msra.mxu0 0.0
        %1755 = vmatprep.subr.mxu0 0.0
        %1756 = vmatpush1.msra.mxu0 0.0
        %1757 = vmatprep.subr.mxu0 0.0
        %1758 = vmatpush1.msra.mxu0 0.0
        %1759 = vmatprep.subr.mxu0 0.0
        %1760 = vmatpush1.msra.mxu0 0.0
        %1761 = vmatprep.subr.mxu0 0.0
        %1762 = vmatpush1.msra.mxu0 0.0
        %1763 = vmatprep.subr.mxu0 0.0
        %1764 = vmatpush1.msra.mxu0 0.0
        %1765 = vmatprep.subr.mxu0 0.0
        %1766 = vmatpush1.msra.mxu0 0.0
        %1767 = vmatprep.subr.mxu0 0.0
        %1768 = vmatpush1.msra.mxu0 0.0
        %1769 = vmatprep.subr.mxu0 0.0
        %1770 = vmatpush1.msra.mxu0 0.0
        %1771 = vmatprep.subr.mxu0 0.0
        %1772 = vmatpush1.msra.mxu0 0.0
        %1773 = vmatprep.subr.mxu0 0.0
        %1774 = vmatpush1.msra.mxu0 0.0
        %1775 = vmatprep.subr.mxu0 0.0
        %1776 = vmatpush1.msra.mxu0 0.0
        %1777 = vmatprep.subr.mxu0 0.0
        %1778 = vmatpush1.msra.mxu0 0.0
        %1779 = vmatprep.subr.mxu0 0.0
        %1780 = vmatpush1.msra.mxu0 0.0
        %1781 = vmatprep.subr.mxu0 0.0
        %1782 = vmatpush1.msra.mxu0 0.0
        %1783 = vmatprep.subr.mxu0 0.0
        %1784 = vmatpush1.msra.mxu0 0.0
        %1785 = vmatprep.subr.mxu0 0.0
        %1786 = vmatpush1.msra.mxu0 0.0
        %1787 = vmatprep.subr.mxu0 0.0
        %1788 = vmatpush1.msra.mxu0 0.0
        %1789 = vmatprep.mubr.f32.mxu0 0.0
        %1790 = vmatmul.mubr.f32.gmra.mrb[0].mxu0 %v1717
        %v1791 = vpop.f32.mrb[0].mxu0
        %v1792 = vadd.f32 0.0, %v1791
        %v1793 = vpop.f32.mrb[0].mxu0
        %v1794 = vadd.f32 0.0, %v1793
        %1795 = vdwg.mxu0
        %1796 = vmatprep.subr.mxu0 0.0
        %1797 = vmatpush1.msra.mxu0 %v1723
        %1798 = vmatprep.subr.mxu0 0.0
        %1799 = vmatpush1.msra.mxu0 0.0
        %1800 = vmatprep.subr.mxu0 0.0
        %1801 = vmatpush1.msra.mxu0 0.0
        %1802 = vmatprep.subr.mxu0 0.0
        %1803 = vmatpush1.msra.mxu0 0.0
        %1804 = vmatprep.subr.mxu0 0.0
        %1805 = vmatpush1.msra.mxu0 0.0
        %1806 = vmatprep.subr.mxu0 0.0
        %1807 = vmatpush1.msra.mxu0 0.0
        %1808 = vmatprep.subr.mxu0 0.0
        %1809 = vmatpush1.msra.mxu0 0.0
        %1810 = vmatprep.subr.mxu0 0.0
        %1811 = vmatpush1.msra.mxu0 0.0
        %1812 = vmatprep.subr.mxu0 0.0
        %1813 = vmatpush1.msra.mxu0 0.0
        %1814 = vmatprep.subr.mxu0 0.0
        %1815 = vmatpush1.msra.mxu0 0.0
        %1816 = vmatprep.subr.mxu0 0.0
        %1817 = vmatpush1.msra.mxu0 0.0
        %1818 = vmatprep.subr.mxu0 0.0
        %1819 = vmatpush1.msra.mxu0 0.0
        %1820 = vmatprep.subr.mxu0 0.0
        %1821 = vmatpush1.msra.mxu0 0.0
        %1822 = vmatprep.subr.mxu0 0.0
        %1823 = vmatpush1.msra.mxu0 0.0
        %1824 = vmatprep.subr.mxu0 0.0
        %1825 = vmatpush1.msra.mxu0 0.0
        %1826 = vmatprep.subr.mxu0 0.0
        %1827 = vmatpush1.msra.mxu0 0.0
        %1828 = vmatprep.subr.mxu0 0.0
        %1829 = vmatpush1.msra.mxu0 0.0
        %1830 = vmatprep.subr.mxu0 0.0
        %1831 = vmatpush1.msra.mxu0 0.0
        %1832 = vmatprep.subr.mxu0 0.0
        %1833 = vmatpush1.msra.mxu0 0.0
        %1834 = vmatprep.subr.mxu0 0.0
        %1835 = vmatpush1.msra.mxu0 0.0
        %1836 = vmatprep.subr.mxu0 0.0
        %1837 = vmatpush1.msra.mxu0 0.0
        %1838 = vmatprep.subr.mxu0 0.0
        %1839 = vmatpush1.msra.mxu0 0.0
        %1840 = vmatprep.subr.mxu0 0.0
        %1841 = vmatpush1.msra.mxu0 0.0
        %1842 = vmatprep.subr.mxu0 0.0
        %1843 = vmatpush1.msra.mxu0 0.0
        %1844 = vmatprep.subr.mxu0 0.0
        %1845 = vmatpush1.msra.mxu0 0.0
        %1846 = vmatprep.subr.mxu0 0.0
        %1847 = vmatpush1.msra.mxu0 0.0
        %1848 = vmatprep.subr.mxu0 0.0
        %1849 = vmatpush1.msra.mxu0 0.0
        %1850 = vmatprep.subr.mxu0 0.0
        %1851 = vmatpush1.msra.mxu0 0.0
        %1852 = vmatprep.subr.mxu0 0.0
        %1853 = vmatpush1.msra.mxu0 0.0
        %1854 = vmatprep.subr.mxu0 0.0
        %1855 = vmatpush1.msra.mxu0 0.0
        %1856 = vmatprep.subr.mxu0 0.0
        %1857 = vmatpush1.msra.mxu0 0.0
        %1858 = vmatprep.subr.mxu0 0.0
        %1859 = vmatpush1.msra.mxu0 0.0
        %1860 = vmatprep.mubr.f32.mxu0 0.0
        %1861 = vmatmul.mubr.f32.gmra.mrb[0].mxu0 %v1717
        %v1862 = vpop.f32.mrb[0].mxu0
        %v1863 = vadd.f32 0.0, %v1862
        %v1864 = vpop.f32.mrb[0].mxu0
        %1865 = vdwg.mxu0
        %v1866 = vadd.f32 %v1702, %v1792
        %v1867 = vadd.f32 %v1703, %v1794
        %v1868 = vadd.f32 %v1704, %v1863
        %s1869 = scalar_lea.vmem %s1, 56
        %v1870 = vld [vmem:[%s1869] sm:$0xff]
        %1871 = vrot.lane.b32.xlu0 %v711, 91
        %v1872 = vpop.permute.xlu0 %1871
        %1873 = vrot.lane.b32.xlu0 %v725, 91
        %v1874 = vpop.permute.xlu0 %1873
        %1875 = vrot.lane.b32.xlu0 %v733, 91
        %v1876 = vpop.permute.xlu0 %1875
        %vm1877 = vcmask 744448
        %v1878 = vsel %vm1877, %v1872, %v1874
        %v1879 = vsel %vm1877, %v1874, %v1876
        %v1881 = vsel %vm749, %v1870, 0
        %v1883 = vsel %vm753, %v1878, 0
        %v1885 = vsel %vm753, %v1879, 0
        %v1887 = vsel %vm753, %v1876, 0
        %1889 = vmatprep.subr.mxu0 %v1885
        %1890 = vmatpush1.msra.mxu0 %v1883
        %1891 = vmatprep.subr.mxu0 0.0
        %1892 = vmatpush1.msra.mxu0 0.0
        %1893 = vmatprep.subr.mxu0 0.0
        %1894 = vmatpush1.msra.mxu0 0.0
        %1895 = vmatprep.subr.mxu0 0.0
        %1896 = vmatpush1.msra.mxu0 0.0
        %1897 = vmatprep.subr.mxu0 0.0
        %1898 = vmatpush1.msra.mxu0 0.0
        %1899 = vmatprep.subr.mxu0 0.0
        %1900 = vmatpush1.msra.mxu0 0.0
        %1901 = vmatprep.subr.mxu0 0.0
        %1902 = vmatpush1.msra.mxu0 0.0
        %1903 = vmatprep.subr.mxu0 0.0
        %1904 = vmatpush1.msra.mxu0 0.0
        %1905 = vmatprep.subr.mxu0 0.0
        %1906 = vmatpush1.msra.mxu0 0.0
        %1907 = vmatprep.subr.mxu0 0.0
        %1908 = vmatpush1.msra.mxu0 0.0
        %1909 = vmatprep.subr.mxu0 0.0
        %1910 = vmatpush1.msra.mxu0 0.0
        %1911 = vmatprep.subr.mxu0 0.0
        %1912 = vmatpush1.msra.mxu0 0.0
        %1913 = vmatprep.subr.mxu0 0.0
        %1914 = vmatpush1.msra.mxu0 0.0
        %1915 = vmatprep.subr.mxu0 0.0
        %1916 = vmatpush1.msra.mxu0 0.0
        %1917 = vmatprep.subr.mxu0 0.0
        %1918 = vmatpush1.msra.mxu0 0.0
        %1919 = vmatprep.subr.mxu0 0.0
        %1920 = vmatpush1.msra.mxu0 0.0
        %1921 = vmatprep.subr.mxu0 0.0
        %1922 = vmatpush1.msra.mxu0 0.0
        %1923 = vmatprep.subr.mxu0 0.0
        %1924 = vmatpush1.msra.mxu0 0.0
        %1925 = vmatprep.subr.mxu0 0.0
        %1926 = vmatpush1.msra.mxu0 0.0
        %1927 = vmatprep.subr.mxu0 0.0
        %1928 = vmatpush1.msra.mxu0 0.0
        %1929 = vmatprep.subr.mxu0 0.0
        %1930 = vmatpush1.msra.mxu0 0.0
        %1931 = vmatprep.subr.mxu0 0.0
        %1932 = vmatpush1.msra.mxu0 0.0
        %1933 = vmatprep.subr.mxu0 0.0
        %1934 = vmatpush1.msra.mxu0 0.0
        %1935 = vmatprep.subr.mxu0 0.0
        %1936 = vmatpush1.msra.mxu0 0.0
        %1937 = vmatprep.subr.mxu0 0.0
        %1938 = vmatpush1.msra.mxu0 0.0
        %1939 = vmatprep.subr.mxu0 0.0
        %1940 = vmatpush1.msra.mxu0 0.0
        %1941 = vmatprep.subr.mxu0 0.0
        %1942 = vmatpush1.msra.mxu0 0.0
        %1943 = vmatprep.subr.mxu0 0.0
        %1944 = vmatpush1.msra.mxu0 0.0
        %1945 = vmatprep.subr.mxu0 0.0
        %1946 = vmatpush1.msra.mxu0 0.0
        %1947 = vmatprep.subr.mxu0 0.0
        %1948 = vmatpush1.msra.mxu0 0.0
        %1949 = vmatprep.subr.mxu0 0.0
        %1950 = vmatpush1.msra.mxu0 0.0
        %1951 = vmatprep.subr.mxu0 0.0
        %1952 = vmatpush1.msra.mxu0 0.0
        %1953 = vmatprep.mubr.f32.mxu0 0.0
        %1954 = vmatmul.mubr.f32.gmra.mrb[0].mxu0 %v1881
        %v1955 = vpop.f32.mrb[0].mxu0
        %v1956 = vadd.f32 0.0, %v1955
        %v1957 = vpop.f32.mrb[0].mxu0
        %v1958 = vadd.f32 0.0, %v1957
        %1959 = vdwg.mxu0
        %1960 = vmatprep.subr.mxu0 0.0
        %1961 = vmatpush1.msra.mxu0 %v1887
        %1962 = vmatprep.subr.mxu0 0.0
        %1963 = vmatpush1.msra.mxu0 0.0
        %1964 = vmatprep.subr.mxu0 0.0
        %1965 = vmatpush1.msra.mxu0 0.0
        %1966 = vmatprep.subr.mxu0 0.0
        %1967 = vmatpush1.msra.mxu0 0.0
        %1968 = vmatprep.subr.mxu0 0.0
        %1969 = vmatpush1.msra.mxu0 0.0
        %1970 = vmatprep.subr.mxu0 0.0
        %1971 = vmatpush1.msra.mxu0 0.0
        %1972 = vmatprep.subr.mxu0 0.0
        %1973 = vmatpush1.msra.mxu0 0.0
        %1974 = vmatprep.subr.mxu0 0.0
        %1975 = vmatpush1.msra.mxu0 0.0
        %1976 = vmatprep.subr.mxu0 0.0
        %1977 = vmatpush1.msra.mxu0 0.0
        %1978 = vmatprep.subr.mxu0 0.0
        %1979 = vmatpush1.msra.mxu0 0.0
        %1980 = vmatprep.subr.mxu0 0.0
        %1981 = vmatpush1.msra.mxu0 0.0
        %1982 = vmatprep.subr.mxu0 0.0
        %1983 = vmatpush1.msra.mxu0 0.0
        %1984 = vmatprep.subr.mxu0 0.0
        %1985 = vmatpush1.msra.mxu0 0.0
        %1986 = vmatprep.subr.mxu0 0.0
        %1987 = vmatpush1.msra.mxu0 0.0
        %1988 = vmatprep.subr.mxu0 0.0
        %1989 = vmatpush1.msra.mxu0 0.0
        %1990 = vmatprep.subr.mxu0 0.0
        %1991 = vmatpush1.msra.mxu0 0.0
        %1992 = vmatprep.subr.mxu0 0.0
        %1993 = vmatpush1.msra.mxu0 0.0
        %1994 = vmatprep.subr.mxu0 0.0
        %1995 = vmatpush1.msra.mxu0 0.0
        %1996 = vmatprep.subr.mxu0 0.0
        %1997 = vmatpush1.msra.mxu0 0.0
        %1998 = vmatprep.subr.mxu0 0.0
        %1999 = vmatpush1.msra.mxu0 0.0
        %2000 = vmatprep.subr.mxu0 0.0
        %2001 = vmatpush1.msra.mxu0 0.0
        %2002 = vmatprep.subr.mxu0 0.0
        %2003 = vmatpush1.msra.mxu0 0.0
        %2004 = vmatprep.subr.mxu0 0.0
        %2005 = vmatpush1.msra.mxu0 0.0
        %2006 = vmatprep.subr.mxu0 0.0
        %2007 = vmatpush1.msra.mxu0 0.0
        %2008 = vmatprep.subr.mxu0 0.0
        %2009 = vmatpush1.msra.mxu0 0.0
        %2010 = vmatprep.subr.mxu0 0.0
        %2011 = vmatpush1.msra.mxu0 0.0
        %2012 = vmatprep.subr.mxu0 0.0
        %2013 = vmatpush1.msra.mxu0 0.0
        %2014 = vmatprep.subr.mxu0 0.0
        %2015 = vmatpush1.msra.mxu0 0.0
        %2016 = vmatprep.subr.mxu0 0.0
        %2017 = vmatpush1.msra.mxu0 0.0
        %2018 = vmatprep.subr.mxu0 0.0
        %2019 = vmatpush1.msra.mxu0 0.0
        %2020 = vmatprep.subr.mxu0 0.0
        %2021 = vmatpush1.msra.mxu0 0.0
        %2022 = vmatprep.subr.mxu0 0.0
        %2023 = vmatpush1.msra.mxu0 0.0
        %2024 = vmatprep.mubr.f32.mxu0 0.0
        %2025 = vmatmul.mubr.f32.gmra.mrb[0].mxu0 %v1881
        %v2026 = vpop.f32.mrb[0].mxu0
        %v2027 = vadd.f32 0.0, %v2026
        %v2028 = vpop.f32.mrb[0].mxu0
        %2029 = vdwg.mxu0
        %v2030 = vadd.f32 %v1866, %v1956
        %v2031 = vadd.f32 %v1867, %v1958
        %v2032 = vadd.f32 %v1868, %v2027
        %s2033 = scalar_lea.vmem %s1, 64
        %v2034 = vld [vmem:[%s2033] sm:$0xff]
        %2035 = vrot.lane.b32.xlu0 %v711, 90
        %v2036 = vpop.permute.xlu0 %2035
        %2037 = vrot.lane.b32.xlu0 %v725, 90
        %v2038 = vpop.permute.xlu0 %2037
        %2039 = vrot.lane.b32.xlu0 %v733, 90
        %v2040 = vpop.permute.xlu0 %2039
        %v2041 = vsel %vm706, %v2036, %v2038
        %v2042 = vsel %vm706, %v2038, %v2040
        %v2044 = vsel %vm749, %v2034, 0
        %v2046 = vsel %vm753, %v2041, 0
        %v2048 = vsel %vm753, %v2042, 0
        %v2050 = vsel %vm753, %v2040, 0
        %2052 = vmatprep.subr.mxu0 %v2048
        %2053 = vmatpush1.msra.mxu0 %v2046
        %2054 = vmatprep.subr.mxu0 0.0
        %2055 = vmatpush1.msra.mxu0 0.0
        %2056 = vmatprep.subr.mxu0 0.0
        %2057 = vmatpush1.msra.mxu0 0.0
        %2058 = vmatprep.subr.mxu0 0.0
        %2059 = vmatpush1.msra.mxu0 0.0
        %2060 = vmatprep.subr.mxu0 0.0
        %2061 = vmatpush1.msra.mxu0 0.0
        %2062 = vmatprep.subr.mxu0 0.0
        %2063 = vmatpush1.msra.mxu0 0.0
        %2064 = vmatprep.subr.mxu0 0.0
        %2065 = vmatpush1.msra.mxu0 0.0
        %2066 = vmatprep.subr.mxu0 0.0
        %2067 = vmatpush1.msra.mxu0 0.0
        %2068 = vmatprep.subr.mxu0 0.0
        %2069 = vmatpush1.msra.mxu0 0.0
        %2070 = vmatprep.subr.mxu0 0.0
        %2071 = vmatpush1.msra.mxu0 0.0
        %2072 = vmatprep.subr.mxu0 0.0
        %2073 = vmatpush1.msra.mxu0 0.0
        %2074 = vmatprep.subr.mxu0 0.0
        %2075 = vmatpush1.msra.mxu0 0.0
        %2076 = vmatprep.subr.mxu0 0.0
        %2077 = vmatpush1.msra.mxu0 0.0
        %2078 = vmatprep.subr.mxu0 0.0
        %2079 = vmatpush1.msra.mxu0 0.0
        %2080 = vmatprep.subr.mxu0 0.0
        %2081 = vmatpush1.msra.mxu0 0.0
        %2082 = vmatprep.subr.mxu0 0.0
        %2083 = vmatpush1.msra.mxu0 0.0
        %2084 = vmatprep.subr.mxu0 0.0
        %2085 = vmatpush1.msra.mxu0 0.0
        %2086 = vmatprep.subr.mxu0 0.0
        %2087 = vmatpush1.msra.mxu0 0.0
        %2088 = vmatprep.subr.mxu0 0.0
        %2089 = vmatpush1.msra.mxu0 0.0
        %2090 = vmatprep.subr.mxu0 0.0
        %2091 = vmatpush1.msra.mxu0 0.0
        %2092 = vmatprep.subr.mxu0 0.0
        %2093 = vmatpush1.msra.mxu0 0.0
        %2094 = vmatprep.subr.mxu0 0.0
        %2095 = vmatpush1.msra.mxu0 0.0
        %2096 = vmatprep.subr.mxu0 0.0
        %2097 = vmatpush1.msra.mxu0 0.0
        %2098 = vmatprep.subr.mxu0 0.0
        %2099 = vmatpush1.msra.mxu0 0.0
        %2100 = vmatprep.subr.mxu0 0.0
        %2101 = vmatpush1.msra.mxu0 0.0
        %2102 = vmatprep.subr.mxu0 0.0
        %2103 = vmatpush1.msra.mxu0 0.0
        %2104 = vmatprep.subr.mxu0 0.0
        %2105 = vmatpush1.msra.mxu0 0.0
        %2106 = vmatprep.subr.mxu0 0.0
        %2107 = vmatpush1.msra.mxu0 0.0
        %2108 = vmatprep.subr.mxu0 0.0
        %2109 = vmatpush1.msra.mxu0 0.0
        %2110 = vmatprep.subr.mxu0 0.0
        %2111 = vmatpush1.msra.mxu0 0.0
        %2112 = vmatprep.subr.mxu0 0.0
        %2113 = vmatpush1.msra.mxu0 0.0
        %2114 = vmatprep.subr.mxu0 0.0
        %2115 = vmatpush1.msra.mxu0 0.0
        %2116 = vmatprep.mubr.f32.mxu0 0.0
        %2117 = vmatmul.mubr.f32.gmra.mrb[0].mxu0 %v2044
        %v2118 = vpop.f32.mrb[0].mxu0
        %v2119 = vadd.f32 0.0, %v2118
        %v2120 = vpop.f32.mrb[0].mxu0
        %v2121 = vadd.f32 0.0, %v2120
        %2122 = vdwg.mxu0
        %2123 = vmatprep.subr.mxu0 0.0
        %2124 = vmatpush1.msra.mxu0 %v2050
        %2125 = vmatprep.subr.mxu0 0.0
        %2126 = vmatpush1.msra.mxu0 0.0
        %2127 = vmatprep.subr.mxu0 0.0
        %2128 = vmatpush1.msra.mxu0 0.0
        %2129 = vmatprep.subr.mxu0 0.0
        %2130 = vmatpush1.msra.mxu0 0.0
        %2131 = vmatprep.subr.mxu0 0.0
        %2132 = vmatpush1.msra.mxu0 0.0
        %2133 = vmatprep.subr.mxu0 0.0
        %2134 = vmatpush1.msra.mxu0 0.0
        %2135 = vmatprep.subr.mxu0 0.0
        %2136 = vmatpush1.msra.mxu0 0.0
        %2137 = vmatprep.subr.mxu0 0.0
        %2138 = vmatpush1.msra.mxu0 0.0
        %2139 = vmatprep.subr.mxu0 0.0
        %2140 = vmatpush1.msra.mxu0 0.0
        %2141 = vmatprep.subr.mxu0 0.0
        %2142 = vmatpush1.msra.mxu0 0.0
        %2143 = vmatprep.subr.mxu0 0.0
        %2144 = vmatpush1.msra.mxu0 0.0
        %2145 = vmatprep.subr.mxu0 0.0
        %2146 = vmatpush1.msra.mxu0 0.0
        %2147 = vmatprep.subr.mxu0 0.0
        %2148 = vmatpush1.msra.mxu0 0.0
        %2149 = vmatprep.subr.mxu0 0.0
        %2150 = vmatpush1.msra.mxu0 0.0
        %2151 = vmatprep.subr.mxu0 0.0
        %2152 = vmatpush1.msra.mxu0 0.0
        %2153 = vmatprep.subr.mxu0 0.0
        %2154 = vmatpush1.msra.mxu0 0.0
        %2155 = vmatprep.subr.mxu0 0.0
        %2156 = vmatpush1.msra.mxu0 0.0
        %2157 = vmatprep.subr.mxu0 0.0
        %2158 = vmatpush1.msra.mxu0 0.0
        %2159 = vmatprep.subr.mxu0 0.0
        %2160 = vmatpush1.msra.mxu0 0.0
        %2161 = vmatprep.subr.mxu0 0.0
        %2162 = vmatpush1.msra.mxu0 0.0
        %2163 = vmatprep.subr.mxu0 0.0
        %2164 = vmatpush1.msra.mxu0 0.0
        %2165 = vmatprep.subr.mxu0 0.0
        %2166 = vmatpush1.msra.mxu0 0.0
        %2167 = vmatprep.subr.mxu0 0.0
        %2168 = vmatpush1.msra.mxu0 0.0
        %2169 = vmatprep.subr.mxu0 0.0
        %2170 = vmatpush1.msra.mxu0 0.0
        %2171 = vmatprep.subr.mxu0 0.0
        %2172 = vmatpush1.msra.mxu0 0.0
        %2173 = vmatprep.subr.mxu0 0.0
        %2174 = vmatpush1.msra.mxu0 0.0
        %2175 = vmatprep.subr.mxu0 0.0
        %2176 = vmatpush1.msra.mxu0 0.0
        %2177 = vmatprep.subr.mxu0 0.0
        %2178 = vmatpush1.msra.mxu0 0.0
        %2179 = vmatprep.subr.mxu0 0.0
        %2180 = vmatpush1.msra.mxu0 0.0
        %2181 = vmatprep.subr.mxu0 0.0
        %2182 = vmatpush1.msra.mxu0 0.0
        %2183 = vmatprep.subr.mxu0 0.0
        %2184 = vmatpush1.msra.mxu0 0.0
        %2185 = vmatprep.subr.mxu0 0.0
        %2186 = vmatpush1.msra.mxu0 0.0
        %2187 = vmatprep.mubr.f32.mxu0 0.0
        %2188 = vmatmul.mubr.f32.gmra.mrb[0].mxu0 %v2044
        %v2189 = vpop.f32.mrb[0].mxu0
        %v2190 = vadd.f32 0.0, %v2189
        %v2191 = vpop.f32.mrb[0].mxu0
        %2192 = vdwg.mxu0
        %v2193 = vadd.f32 %v2030, %v2119
        %v2194 = vadd.f32 %v2031, %v2121
        %v2195 = vadd.f32 %v2032, %v2190
        %2197 = vrot.lane.b32.xlu0 %v2193, 110
        %v2198 = vpop.permute.xlu0 %2197
        %2200 = vrot.lane.b32.xlu0 %v2193, 92
        %v2201 = vpop.permute.xlu0 %2200
        %2203 = vrot.lane.b32.xlu0 %v2193, 74
        %v2204 = vpop.permute.xlu0 %2203
        %2206 = vrot.lane.b32.xlu0 %v2193, 56
        %v2207 = vpop.permute.xlu0 %2206
        %2209 = vrot.lane.b32.xlu0 %v2193, 38
        %v2210 = vpop.permute.xlu0 %2209
        %2212 = vrot.lane.b32.xlu0 %v2193, 20
        %v2213 = vpop.permute.xlu0 %2212
        %2216 = vrot.lane.b32.xlu0 %v2193, 2
        %v2217 = vpop.permute.xlu0 %2216
        %2218 = vrot.lane.b32.xlu0 %v2194, 2
        %v2219 = vpop.permute.xlu0 %2218
        %vm2220 = vcmask 15360
        %v2221 = vsel %vm2220, %v2217, %v2219
        %2223 = vrot.lane.b32.xlu0 %v2194, 112
        %v2224 = vpop.permute.xlu0 %2223
        %2226 = vrot.lane.b32.xlu0 %v2194, 94
        %v2227 = vpop.permute.xlu0 %2226
        %2229 = vrot.lane.b32.xlu0 %v2194, 76
        %v2230 = vpop.permute.xlu0 %2229
        %2232 = vrot.lane.b32.xlu0 %v2194, 58
        %v2233 = vpop.permute.xlu0 %2232
        %2235 = vrot.lane.b32.xlu0 %v2194, 40
        %v2236 = vpop.permute.xlu0 %2235
        %2238 = vrot.lane.b32.xlu0 %v2194, 22
        %v2239 = vpop.permute.xlu0 %2238
        %2242 = vrot.lane.b32.xlu0 %v2194, 4
        %v2243 = vpop.permute.xlu0 %2242
        %2244 = vrot.lane.b32.xlu0 %v2195, 4
        %v2245 = vpop.permute.xlu0 %2244
        %v2246 = vsel %vm749, %v2243, %v2245
        %2248 = vrot.lane.b32.xlu0 %v2195, 114
        %v2249 = vpop.permute.xlu0 %2248
        %v2251 = vcombine.low %v2193, %v2201
        %v2252 = vcombine.high %v2193, %v2201
        %v2254 = vunpack.c.l.s4 1983009808
        %v2255 = vunpack.c.0.s8 %v2254
        %v2256 = vlaneseq
        %v2257 = vshrl.u32 %v2256, 7
        %v2258 = vsub.s32 %v2255, %v2257
        %v2259 = vrot.slane %v2251, %v2258
        %v2261 = vunpack.c.l.s4 1983009808
        %v2262 = vunpack.c.0.s8 %v2261
        %v2263 = vlaneseq
        %v2264 = vshrl.u32 %v2263, 7
        %v2265 = vsub.s32 %v2262, %v2264
        %v2266 = vrot.slane %v2252, %v2265
        %v2267 = vcombine.low %v2198, %v2204
        %v2268 = vcombine.high %v2198, %v2204
        %v2270 = vunpack.c.l.s4 1983009808
        %v2271 = vunpack.c.0.s8 %v2270
        %v2272 = vlaneseq
        %v2273 = vshrl.u32 %v2272, 7
        %v2274 = vsub.s32 %v2271, %v2273
        %v2275 = vrot.slane %v2267, %v2274
        %v2277 = vunpack.c.l.s4 1983009808
        %v2278 = vunpack.c.0.s8 %v2277
        %v2279 = vlaneseq
        %v2280 = vshrl.u32 %v2279, 7
        %v2281 = vsub.s32 %v2278, %v2280
        %v2282 = vrot.slane %v2268, %v2281
        %v2283 = vcombine.low %v2207, %v2213
        %v2284 = vcombine.high %v2207, %v2213
        %v2286 = vunpack.c.l.s4 1983009808
        %v2287 = vunpack.c.0.s8 %v2286
        %v2288 = vlaneseq
        %v2289 = vshrl.u32 %v2288, 7
        %v2290 = vsub.s32 %v2287, %v2289
        %v2291 = vrot.slane %v2283, %v2290
        %v2293 = vunpack.c.l.s4 1983009808
        %v2294 = vunpack.c.0.s8 %v2293
        %v2295 = vlaneseq
        %v2296 = vshrl.u32 %v2295, 7
        %v2297 = vsub.s32 %v2294, %v2296
        %v2298 = vrot.slane %v2284, %v2297
        %v2299 = vcombine.low %v2210, %v2221
        %v2300 = vcombine.high %v2210, %v2221
        %v2302 = vunpack.c.l.s4 1983009808
        %v2303 = vunpack.c.0.s8 %v2302
        %v2304 = vlaneseq
        %v2305 = vshrl.u32 %v2304, 7
        %v2306 = vsub.s32 %v2303, %v2305
        %v2307 = vrot.slane %v2299, %v2306
        %v2309 = vunpack.c.l.s4 1983009808
        %v2310 = vunpack.c.0.s8 %v2309
        %v2311 = vlaneseq
        %v2312 = vshrl.u32 %v2311, 7
        %v2313 = vsub.s32 %v2310, %v2312
        %v2314 = vrot.slane %v2300, %v2313
        %v2315 = vcombine.low %v2259, %v2275
        %v2316 = vcombine.high %v2259, %v2275
        %v2318 = vunpack.c.l.s4 1934713408
        %v2319 = vunpack.c.0.s8 %v2318
        %v2320 = vlaneseq
        %v2321 = vshrl.u32 %v2320, 7
        %v2322 = vsub.s32 %v2319, %v2321
        %v2323 = vrot.slane %v2315, %v2322
        %v2325 = vunpack.c.l.s4 1934713408
        %v2326 = vunpack.c.0.s8 %v2325
        %v2327 = vlaneseq
        %v2328 = vshrl.u32 %v2327, 7
        %v2329 = vsub.s32 %v2326, %v2328
        %v2330 = vrot.slane %v2316, %v2329
        %v2331 = vcombine.low %v2266, %v2282
        %v2332 = vcombine.high %v2266, %v2282
        %v2334 = vunpack.c.l.s4 1934713408
        %v2335 = vunpack.c.0.s8 %v2334
        %v2336 = vlaneseq
        %v2337 = vshrl.u32 %v2336, 7
        %v2338 = vsub.s32 %v2335, %v2337
        %v2339 = vrot.slane %v2331, %v2338
        %v2341 = vunpack.c.l.s4 1934713408
        %v2342 = vunpack.c.0.s8 %v2341
        %v2343 = vlaneseq
        %v2344 = vshrl.u32 %v2343, 7
        %v2345 = vsub.s32 %v2342, %v2344
        %v2346 = vrot.slane %v2332, %v2345
        %v2347 = vcombine.low %v2291, %v2307
        %v2348 = vcombine.high %v2291, %v2307
        %v2350 = vunpack.c.l.s4 1934713408
        %v2351 = vunpack.c.0.s8 %v2350
        %v2352 = vlaneseq
        %v2353 = vshrl.u32 %v2352, 7
        %v2354 = vsub.s32 %v2351, %v2353
        %v2355 = vrot.slane %v2347, %v2354
        %v2357 = vunpack.c.l.s4 1934713408
        %v2358 = vunpack.c.0.s8 %v2357
        %v2359 = vlaneseq
        %v2360 = vshrl.u32 %v2359, 7
        %v2361 = vsub.s32 %v2358, %v2360
        %v2362 = vrot.slane %v2348, %v2361
        %v2363 = vcombine.low %v2298, %v2314
        %v2364 = vcombine.high %v2298, %v2314
        %v2366 = vunpack.c.l.s4 1934713408
        %v2367 = vunpack.c.0.s8 %v2366
        %v2368 = vlaneseq
        %v2369 = vshrl.u32 %v2368, 7
        %v2370 = vsub.s32 %v2367, %v2369
        %v2371 = vrot.slane %v2363, %v2370
        %v2373 = vunpack.c.l.s4 1934713408
        %v2374 = vunpack.c.0.s8 %v2373
        %v2375 = vlaneseq
        %v2376 = vshrl.u32 %v2375, 7
        %v2377 = vsub.s32 %v2374, %v2376
        %v2378 = vrot.slane %v2364, %v2377
        %v2379 = vcombine.low %v2323, %v2355
        %v2380 = vcombine.high %v2323, %v2355
        %v2381 = vcombine.low %v2330, %v2362
        %v2382 = vcombine.high %v2330, %v2362
        %v2383 = vcombine.low %v2339, %v2371
        %v2384 = vcombine.high %v2339, %v2371
        %v2385 = vcombine.low %v2346, %v2378
        %v2386 = vcombine.high %v2346, %v2378
        %v2387 = vcombine.low %v2224, %v2230
        %v2388 = vcombine.high %v2224, %v2230
        %v2390 = vunpack.c.l.s4 1983009808
        %v2391 = vunpack.c.0.s8 %v2390
        %v2392 = vlaneseq
        %v2393 = vshrl.u32 %v2392, 7
        %v2394 = vsub.s32 %v2391, %v2393
        %v2395 = vrot.slane %v2387, %v2394
        %v2397 = vunpack.c.l.s4 1983009808
        %v2398 = vunpack.c.0.s8 %v2397
        %v2399 = vlaneseq
        %v2400 = vshrl.u32 %v2399, 7
        %v2401 = vsub.s32 %v2398, %v2400
        %v2402 = vrot.slane %v2388, %v2401
        %v2403 = vcombine.low %v2227, %v2233
        %v2404 = vcombine.high %v2227, %v2233
        %v2406 = vunpack.c.l.s4 1983009808
        %v2407 = vunpack.c.0.s8 %v2406
        %v2408 = vlaneseq
        %v2409 = vshrl.u32 %v2408, 7
        %v2410 = vsub.s32 %v2407, %v2409
        %v2411 = vrot.slane %v2403, %v2410
        %v2413 = vunpack.c.l.s4 1983009808
        %v2414 = vunpack.c.0.s8 %v2413
        %v2415 = vlaneseq
        %v2416 = vshrl.u32 %v2415, 7
        %v2417 = vsub.s32 %v2414, %v2416
        %v2418 = vrot.slane %v2404, %v2417
        %v2419 = vcombine.low %v2236, %v2246
        %v2420 = vcombine.high %v2236, %v2246
        %v2422 = vunpack.c.l.s4 1983009808
        %v2423 = vunpack.c.0.s8 %v2422
        %v2424 = vlaneseq
        %v2425 = vshrl.u32 %v2424, 7
        %v2426 = vsub.s32 %v2423, %v2425
        %v2427 = vrot.slane %v2419, %v2426
        %v2429 = vunpack.c.l.s4 1983009808
        %v2430 = vunpack.c.0.s8 %v2429
        %v2431 = vlaneseq
        %v2432 = vshrl.u32 %v2431, 7
        %v2433 = vsub.s32 %v2430, %v2432
        %v2434 = vrot.slane %v2420, %v2433
        %v2435 = vcombine.low %v2239, %v2249
        %v2436 = vcombine.high %v2239, %v2249
        %v2438 = vunpack.c.l.s4 1983009808
        %v2439 = vunpack.c.0.s8 %v2438
        %v2440 = vlaneseq
        %v2441 = vshrl.u32 %v2440, 7
        %v2442 = vsub.s32 %v2439, %v2441
        %v2443 = vrot.slane %v2435, %v2442
        %v2445 = vunpack.c.l.s4 1983009808
        %v2446 = vunpack.c.0.s8 %v2445
        %v2447 = vlaneseq
        %v2448 = vshrl.u32 %v2447, 7
        %v2449 = vsub.s32 %v2446, %v2448
        %v2450 = vrot.slane %v2436, %v2449
        %v2451 = vcombine.low %v2395, %v2411
        %v2452 = vcombine.high %v2395, %v2411
        %v2454 = vunpack.c.l.s4 1934713408
        %v2455 = vunpack.c.0.s8 %v2454
        %v2456 = vlaneseq
        %v2457 = vshrl.u32 %v2456, 7
        %v2458 = vsub.s32 %v2455, %v2457
        %v2459 = vrot.slane %v2451, %v2458
        %v2461 = vunpack.c.l.s4 1934713408
        %v2462 = vunpack.c.0.s8 %v2461
        %v2463 = vlaneseq
        %v2464 = vshrl.u32 %v2463, 7
        %v2465 = vsub.s32 %v2462, %v2464
        %v2466 = vrot.slane %v2452, %v2465
        %v2467 = vcombine.low %v2402, %v2418
        %v2468 = vcombine.high %v2402, %v2418
        %v2470 = vunpack.c.l.s4 1934713408
        %v2471 = vunpack.c.0.s8 %v2470
        %v2472 = vlaneseq
        %v2473 = vshrl.u32 %v2472, 7
        %v2474 = vsub.s32 %v2471, %v2473
        %v2475 = vrot.slane %v2467, %v2474
        %v2477 = vunpack.c.l.s4 1934713408
        %v2478 = vunpack.c.0.s8 %v2477
        %v2479 = vlaneseq
        %v2480 = vshrl.u32 %v2479, 7
        %v2481 = vsub.s32 %v2478, %v2480
        %v2482 = vrot.slane %v2468, %v2481
        %v2483 = vcombine.low %v2427, %v2443
        %v2484 = vcombine.high %v2427, %v2443
        %v2486 = vunpack.c.l.s4 1934713408
        %v2487 = vunpack.c.0.s8 %v2486
        %v2488 = vlaneseq
        %v2489 = vshrl.u32 %v2488, 7
        %v2490 = vsub.s32 %v2487, %v2489
        %v2491 = vrot.slane %v2483, %v2490
        %v2493 = vunpack.c.l.s4 1934713408
        %v2494 = vunpack.c.0.s8 %v2493
        %v2495 = vlaneseq
        %v2496 = vshrl.u32 %v2495, 7
        %v2497 = vsub.s32 %v2494, %v2496
        %v2498 = vrot.slane %v2484, %v2497
        %v2499 = vcombine.low %v2434, %v2450
        %v2500 = vcombine.high %v2434, %v2450
        %v2502 = vunpack.c.l.s4 1934713408
        %v2503 = vunpack.c.0.s8 %v2502
        %v2504 = vlaneseq
        %v2505 = vshrl.u32 %v2504, 7
        %v2506 = vsub.s32 %v2503, %v2505
        %v2507 = vrot.slane %v2499, %v2506
        %v2509 = vunpack.c.l.s4 1934713408
        %v2510 = vunpack.c.0.s8 %v2509
        %v2511 = vlaneseq
        %v2512 = vshrl.u32 %v2511, 7
        %v2513 = vsub.s32 %v2510, %v2512
        %v2514 = vrot.slane %v2500, %v2513
        %v2515 = vcombine.low %v2459, %v2491
        %v2516 = vcombine.high %v2459, %v2491
        %v2517 = vcombine.low %v2466, %v2498
        %v2518 = vcombine.high %v2466, %v2498
        %v2519 = vcombine.low %v2475, %v2507
        %v2520 = vcombine.high %v2475, %v2507
        %v2521 = vcombine.low %v2482, %v2514
        %v2522 = vcombine.high %v2482, %v2514
        %v2523 = vcombine.low %v2379, %v2381
        %v2524 = vcombine.high %v2379, %v2381
        %v2526 = vunpack.c.l.s4 1983009808
        %v2527 = vunpack.c.0.s8 %v2526
        %v2528 = vlaneseq
        %v2529 = vshrl.u32 %v2528, 7
        %v2530 = vsub.s32 %v2527, %v2529
        %v2531 = vrot.slane %v2523, %v2530
        %v2533 = vunpack.c.l.s4 1983009808
        %v2534 = vunpack.c.0.s8 %v2533
        %v2535 = vlaneseq
        %v2536 = vshrl.u32 %v2535, 7
        %v2537 = vsub.s32 %v2534, %v2536
        %v2538 = vrot.slane %v2524, %v2537
        %v2539 = vcombine.low %v2380, %v2382
        %v2540 = vcombine.high %v2380, %v2382
        %v2542 = vunpack.c.l.s4 1983009808
        %v2543 = vunpack.c.0.s8 %v2542
        %v2544 = vlaneseq
        %v2545 = vshrl.u32 %v2544, 7
        %v2546 = vsub.s32 %v2543, %v2545
        %v2547 = vrot.slane %v2539, %v2546
        %v2549 = vunpack.c.l.s4 1983009808
        %v2550 = vunpack.c.0.s8 %v2549
        %v2551 = vlaneseq
        %v2552 = vshrl.u32 %v2551, 7
        %v2553 = vsub.s32 %v2550, %v2552
        %v2554 = vrot.slane %v2540, %v2553
        %v2555 = vcombine.low %v2383, %v2385
        %v2556 = vcombine.high %v2383, %v2385
        %v2558 = vunpack.c.l.s4 1983009808
        %v2559 = vunpack.c.0.s8 %v2558
        %v2560 = vlaneseq
        %v2561 = vshrl.u32 %v2560, 7
        %v2562 = vsub.s32 %v2559, %v2561
        %v2563 = vrot.slane %v2555, %v2562
        %v2565 = vunpack.c.l.s4 1983009808
        %v2566 = vunpack.c.0.s8 %v2565
        %v2567 = vlaneseq
        %v2568 = vshrl.u32 %v2567, 7
        %v2569 = vsub.s32 %v2566, %v2568
        %v2570 = vrot.slane %v2556, %v2569
        %v2571 = vcombine.low %v2384, %v2386
        %v2572 = vcombine.high %v2384, %v2386
        %v2574 = vunpack.c.l.s4 1983009808
        %v2575 = vunpack.c.0.s8 %v2574
        %v2576 = vlaneseq
        %v2577 = vshrl.u32 %v2576, 7
        %v2578 = vsub.s32 %v2575, %v2577
        %v2579 = vrot.slane %v2571, %v2578
        %v2581 = vunpack.c.l.s4 1983009808
        %v2582 = vunpack.c.0.s8 %v2581
        %v2583 = vlaneseq
        %v2584 = vshrl.u32 %v2583, 7
        %v2585 = vsub.s32 %v2582, %v2584
        %v2586 = vrot.slane %v2572, %v2585
        %v2587 = vcombine.low %v2531, %v2547
        %v2588 = vcombine.high %v2531, %v2547
        %v2590 = vunpack.c.l.s4 1934713408
        %v2591 = vunpack.c.0.s8 %v2590
        %v2592 = vlaneseq
        %v2593 = vshrl.u32 %v2592, 7
        %v2594 = vsub.s32 %v2591, %v2593
        %v2595 = vrot.slane %v2587, %v2594
        %v2597 = vunpack.c.l.s4 1934713408
        %v2598 = vunpack.c.0.s8 %v2597
        %v2599 = vlaneseq
        %v2600 = vshrl.u32 %v2599, 7
        %v2601 = vsub.s32 %v2598, %v2600
        %v2602 = vrot.slane %v2588, %v2601
        %v2603 = vcombine.low %v2538, %v2554
        %v2604 = vcombine.high %v2538, %v2554
        %v2606 = vunpack.c.l.s4 1934713408
        %v2607 = vunpack.c.0.s8 %v2606
        %v2608 = vlaneseq
        %v2609 = vshrl.u32 %v2608, 7
        %v2610 = vsub.s32 %v2607, %v2609
        %v2611 = vrot.slane %v2603, %v2610
        %v2613 = vunpack.c.l.s4 1934713408
        %v2614 = vunpack.c.0.s8 %v2613
        %v2615 = vlaneseq
        %v2616 = vshrl.u32 %v2615, 7
        %v2617 = vsub.s32 %v2614, %v2616
        %v2618 = vrot.slane %v2604, %v2617
        %v2619 = vcombine.low %v2563, %v2579
        %v2620 = vcombine.high %v2563, %v2579
        %v2622 = vunpack.c.l.s4 1934713408
        %v2623 = vunpack.c.0.s8 %v2622
        %v2624 = vlaneseq
        %v2625 = vshrl.u32 %v2624, 7
        %v2626 = vsub.s32 %v2623, %v2625
        %v2627 = vrot.slane %v2619, %v2626
        %v2629 = vunpack.c.l.s4 1934713408
        %v2630 = vunpack.c.0.s8 %v2629
        %v2631 = vlaneseq
        %v2632 = vshrl.u32 %v2631, 7
        %v2633 = vsub.s32 %v2630, %v2632
        %v2634 = vrot.slane %v2620, %v2633
        %v2635 = vcombine.low %v2570, %v2586
        %v2636 = vcombine.high %v2570, %v2586
        %v2638 = vunpack.c.l.s4 1934713408
        %v2639 = vunpack.c.0.s8 %v2638
        %v2640 = vlaneseq
        %v2641 = vshrl.u32 %v2640, 7
        %v2642 = vsub.s32 %v2639, %v2641
        %v2643 = vrot.slane %v2635, %v2642
        %v2645 = vunpack.c.l.s4 1934713408
        %v2646 = vunpack.c.0.s8 %v2645
        %v2647 = vlaneseq
        %v2648 = vshrl.u32 %v2647, 7
        %v2649 = vsub.s32 %v2646, %v2648
        %v2650 = vrot.slane %v2636, %v2649
        %v2651 = vcombine.low %v2595, %v2627
        %v2652 = vcombine.high %v2595, %v2627
        %v2653 = vcombine.low %v2602, %v2634
        %v2654 = vcombine.high %v2602, %v2634
        %v2655 = vcombine.low %v2611, %v2643
        %v2656 = vcombine.high %v2611, %v2643
        %v2657 = vcombine.low %v2618, %v2650
        %v2658 = vcombine.high %v2618, %v2650
        %v2659 = vcombine.low %v2515, %v2517
        %v2660 = vcombine.high %v2515, %v2517
        %v2662 = vunpack.c.l.s4 1983009808
        %v2663 = vunpack.c.0.s8 %v2662
        %v2664 = vlaneseq
        %v2665 = vshrl.u32 %v2664, 7
        %v2666 = vsub.s32 %v2663, %v2665
        %v2667 = vrot.slane %v2659, %v2666
        %v2669 = vunpack.c.l.s4 1983009808
        %v2670 = vunpack.c.0.s8 %v2669
        %v2671 = vlaneseq
        %v2672 = vshrl.u32 %v2671, 7
        %v2673 = vsub.s32 %v2670, %v2672
        %v2674 = vrot.slane %v2660, %v2673
        %v2675 = vcombine.low %v2516, %v2518
        %v2676 = vcombine.high %v2516, %v2518
        %v2678 = vunpack.c.l.s4 1983009808
        %v2679 = vunpack.c.0.s8 %v2678
        %v2680 = vlaneseq
        %v2681 = vshrl.u32 %v2680, 7
        %v2682 = vsub.s32 %v2679, %v2681
        %v2683 = vrot.slane %v2675, %v2682
        %v2685 = vunpack.c.l.s4 1983009808
        %v2686 = vunpack.c.0.s8 %v2685
        %v2687 = vlaneseq
        %v2688 = vshrl.u32 %v2687, 7
        %v2689 = vsub.s32 %v2686, %v2688
        %v2690 = vrot.slane %v2676, %v2689
        %v2691 = vcombine.low %v2519, %v2521
        %v2692 = vcombine.high %v2519, %v2521
        %v2694 = vunpack.c.l.s4 1983009808
        %v2695 = vunpack.c.0.s8 %v2694
        %v2696 = vlaneseq
        %v2697 = vshrl.u32 %v2696, 7
        %v2698 = vsub.s32 %v2695, %v2697
        %v2699 = vrot.slane %v2691, %v2698
        %v2701 = vunpack.c.l.s4 1983009808
        %v2702 = vunpack.c.0.s8 %v2701
        %v2703 = vlaneseq
        %v2704 = vshrl.u32 %v2703, 7
        %v2705 = vsub.s32 %v2702, %v2704
        %v2706 = vrot.slane %v2692, %v2705
        %v2707 = vcombine.low %v2520, %v2522
        %v2708 = vcombine.high %v2520, %v2522
        %v2710 = vunpack.c.l.s4 1983009808
        %v2711 = vunpack.c.0.s8 %v2710
        %v2712 = vlaneseq
        %v2713 = vshrl.u32 %v2712, 7
        %v2714 = vsub.s32 %v2711, %v2713
        %v2715 = vrot.slane %v2707, %v2714
        %v2717 = vunpack.c.l.s4 1983009808
        %v2718 = vunpack.c.0.s8 %v2717
        %v2719 = vlaneseq
        %v2720 = vshrl.u32 %v2719, 7
        %v2721 = vsub.s32 %v2718, %v2720
        %v2722 = vrot.slane %v2708, %v2721
        %v2723 = vcombine.low %v2667, %v2683
        %v2724 = vcombine.high %v2667, %v2683
        %v2726 = vunpack.c.l.s4 1934713408
        %v2727 = vunpack.c.0.s8 %v2726
        %v2728 = vlaneseq
        %v2729 = vshrl.u32 %v2728, 7
        %v2730 = vsub.s32 %v2727, %v2729
        %v2731 = vrot.slane %v2723, %v2730
        %v2733 = vunpack.c.l.s4 1934713408
        %v2734 = vunpack.c.0.s8 %v2733
        %v2735 = vlaneseq
        %v2736 = vshrl.u32 %v2735, 7
        %v2737 = vsub.s32 %v2734, %v2736
        %v2738 = vrot.slane %v2724, %v2737
        %v2739 = vcombine.low %v2674, %v2690
        %v2740 = vcombine.high %v2674, %v2690
        %v2742 = vunpack.c.l.s4 1934713408
        %v2743 = vunpack.c.0.s8 %v2742
        %v2744 = vlaneseq
        %v2745 = vshrl.u32 %v2744, 7
        %v2746 = vsub.s32 %v2743, %v2745
        %v2747 = vrot.slane %v2739, %v2746
        %v2749 = vunpack.c.l.s4 1934713408
        %v2750 = vunpack.c.0.s8 %v2749
        %v2751 = vlaneseq
        %v2752 = vshrl.u32 %v2751, 7
        %v2753 = vsub.s32 %v2750, %v2752
        %v2754 = vrot.slane %v2740, %v2753
        %v2755 = vcombine.low %v2699, %v2715
        %v2756 = vcombine.high %v2699, %v2715
        %v2758 = vunpack.c.l.s4 1934713408
        %v2759 = vunpack.c.0.s8 %v2758
        %v2760 = vlaneseq
        %v2761 = vshrl.u32 %v2760, 7
        %v2762 = vsub.s32 %v2759, %v2761
        %v2763 = vrot.slane %v2755, %v2762
        %v2765 = vunpack.c.l.s4 1934713408
        %v2766 = vunpack.c.0.s8 %v2765
        %v2767 = vlaneseq
        %v2768 = vshrl.u32 %v2767, 7
        %v2769 = vsub.s32 %v2766, %v2768
        %v2770 = vrot.slane %v2756, %v2769
        %v2771 = vcombine.low %v2706, %v2722
        %v2772 = vcombine.high %v2706, %v2722
        %v2774 = vunpack.c.l.s4 1934713408
        %v2775 = vunpack.c.0.s8 %v2774
        %v2776 = vlaneseq
        %v2777 = vshrl.u32 %v2776, 7
        %v2778 = vsub.s32 %v2775, %v2777
        %v2779 = vrot.slane %v2771, %v2778
        %v2781 = vunpack.c.l.s4 1934713408
        %v2782 = vunpack.c.0.s8 %v2781
        %v2783 = vlaneseq
        %v2784 = vshrl.u32 %v2783, 7
        %v2785 = vsub.s32 %v2782, %v2784
        %v2786 = vrot.slane %v2772, %v2785
        %v2787 = vcombine.low %v2731, %v2763
        %v2788 = vcombine.high %v2731, %v2763
        %v2789 = vcombine.low %v2738, %v2770
        %v2790 = vcombine.high %v2738, %v2770
        %v2791 = vcombine.low %v2747, %v2779
        %v2792 = vcombine.high %v2747, %v2779
        %v2793 = vcombine.low %v2754, %v2786
        %v2794 = vcombine.high %v2754, %v2786
        %2796 = vrot.lane.b32.xlu0 %v2652, 16
        %v2797 = vpop.permute.xlu0 %2796
        %2800 = vrot.lane.b32.xlu0 %v2653, 32
        %v2801 = vpop.permute.xlu0 %2800
        %2804 = vrot.lane.b32.xlu0 %v2654, 48
        %v2805 = vpop.permute.xlu0 %2804
        %2808 = vrot.lane.b32.xlu0 %v2655, 64
        %v2809 = vpop.permute.xlu0 %2808
        %2812 = vrot.lane.b32.xlu0 %v2656, 80
        %v2813 = vpop.permute.xlu0 %2812
        %2816 = vrot.lane.b32.xlu0 %v2657, 96
        %v2817 = vpop.permute.xlu0 %2816
        %2820 = vrot.lane.b32.xlu0 %v2658, 112
        %v2821 = vpop.permute.xlu0 %2820
        %2824 = vrot.lane.b32.xlu0 %v2788, 16
        %v2825 = vpop.permute.xlu0 %2824
        %2828 = vrot.lane.b32.xlu0 %v2789, 32
        %v2829 = vpop.permute.xlu0 %2828
        %2832 = vrot.lane.b32.xlu0 %v2790, 48
        %v2833 = vpop.permute.xlu0 %2832
        %2836 = vrot.lane.b32.xlu0 %v2791, 64
        %v2837 = vpop.permute.xlu0 %2836
        %2840 = vrot.lane.b32.xlu0 %v2792, 80
        %v2841 = vpop.permute.xlu0 %2840
        %2844 = vrot.lane.b32.xlu0 %v2793, 96
        %v2845 = vpop.permute.xlu0 %2844
        %2848 = vrot.lane.b32.xlu0 %v2794, 112
        %v2849 = vpop.permute.xlu0 %2848
        %v2851 = vsel %vm712, %v2651, %v2797
        %v2852 = vsel %vm728, %v2851, %v2801
        %vm2853 = vcmask 392192
        %v2854 = vsel %vm2853, %v2852, %v2805
        %vm2855 = vcmask 523264
        %v2856 = vsel %vm2855, %v2854, %v2809
        %vm2857 = vcmask 654336
        %v2858 = vsel %vm2857, %v2856, %v2813
        %vm2859 = vcmask 785408
        %v2860 = vsel %vm2859, %v2858, %v2817
        %vm2861 = vcmask 916480
        %v2862 = vsel %vm2861, %v2860, %v2821
        %v2863 = vsel %vm712, %v2787, %v2825
        %v2864 = vsel %vm728, %v2863, %v2829
        %v2865 = vsel %vm2853, %v2864, %v2833
        %v2866 = vsel %vm2855, %v2865, %v2837
        %v2867 = vsel %vm2857, %v2866, %v2841
        %v2868 = vsel %vm2859, %v2867, %v2845
        %v2869 = vsel %vm2861, %v2868, %v2849
        %v2870 = vadd.f32 %v2862, %v173
        %v2871 = vadd.f32 %v2869, %v173
        %2872 = vst [vmem:[%s163] sm:$0xff] %v2870
        %2873 = vst [vmem:[%s163 + $0x8] sm:$0xff] %v2871
        %s2874 = sand.u32 %s93, 1
        %s2875 = scalar_lea.sflag [#allocation3], %s2874
        %s2876 = sand.u32 %s93, 1
        %s2877 = smul.addr %s2876, 16
        %s2878 = scalar_lea.vmem [#allocation2], %s2877
        // Predicated region
        $region33: #{tpu_custom_call.1} parent=31 // pred_check
          %p2879 = pneg %p103
        $region34: #{tpu_custom_call.1} parent=31 // pred_check_branch
          %2881 = sbr.rel (%p2879) target = $region36
        $region35: #{tpu_custom_call.1} parent=31 // pred_region
          %s2883 = ssub.s32 256, 256
          %2884 = vsyncadd %s2875, %s2883
          %s2885 = smul.addr %s17, 2
          %s2886 = smul.addr %s2885, 128
          %s2887 = scalar_lea.hbm %s3, %s2886
          %s2889 = sshll.u32 %s2878, 4
          %s2890 = int_to_ptr.vmem [resolvable:$true] %s2889
          %2892 = dma.vmem_to_hbm [thread:$0]  %s2890, 256, %s2887, %s2875
        $region36: #{tpu_custom_call.1} parent=31 // pred_fallthru
          _
      $region32: #{tpu_custom_call.1} parent=5 // pred_fallthru
        _
      %p2893 = scmp.le.s32.totalorder 2, %s12
      // Predicated region
      $region37: #{tpu_custom_call.1} parent=5 // pred_check
        %p2894 = pneg %p2893
      $region38: #{tpu_custom_call.1} parent=5 // pred_check_branch
        %2896 = sbr.rel (%p2894) target = $region40
      $region39: #{tpu_custom_call.1} parent=5 // pred_region
        %s2897 = ssub.s32 %s12, 2
        // Predicated region
        $region41: #{tpu_custom_call.1} parent=39 // pred_check
          %p2898 = pneg %p109
        $region42: #{tpu_custom_call.1} parent=39 // pred_check_branch
          %2900 = sbr.rel (%p2898) target = $region44
        $region43: #{tpu_custom_call.1} parent=39 // pred_region
          %s2901 = sand.u32 %s94, 1
          %s2902 = scalar_lea.sflag [#allocation3], %s2901
          %s2903 = sand.u32 %s94, 1
          %s2904 = smul.addr %s2903, 16
          %s2905 = scalar_lea.vmem [#allocation2], %s2904
          %2906 = dma.done %s2902, 256
        $region44: #{tpu_custom_call.1} parent=39 // pred_fallthru
          _
      $region40: #{tpu_custom_call.1} parent=5 // pred_fallthru
        _
    $region6: #{tpu_custom_call.1} parent=1 // loop_footer
      %s16 = sadd.s32 1, %s12
    $region7: #{tpu_custom_call.1} parent=1 // loop_footer_branch
      %11 = sbr.rel target = $region3
    $region8: #{tpu_custom_call.1} parent=1 // loop_exit
      _
    %2907 = vsyncpa [#allocation3], 1
    %s2908 = scalar_lea.sflag [#allocation3], 1
    %2909 = vsyncpa %s2908, 1

</llo_original>
